<compile_context>
chip_gen: v6e
topology: v6e:2x2x1
jax: 0.10.0
libtpu: 0.0.40
codegen_flags: <defaults>
</compile_context>

<pallas_src>
import jax
import jax.numpy as jnp
import numpy as np
from jax.experimental import pallas as pl
from jax.experimental.pallas import tpu as pltpu

# ---------------------------------------------------------------------------
# Fixed NetB geometry (input 1x14x14, as implied by fc1 = 16*2*2)
# ---------------------------------------------------------------------------
IN_H = IN_W = 14
IN_FLAT = IN_H * IN_W                 # 196
KPAD = 256                            # flattened input padded to 2x128 lanes
C1, C2 = 6, 16
PH1 = PW1 = 6                         # pooled spatial after stage 1
PH2 = PW2 = 2                         # pooled spatial after stage 2
G1 = 256                              # padded pooled-1 width (6*6*6 = 216 -> 256)
G2 = 128                              # padded pooled-2 width (2*2*16 = 64 -> 128)
D1, D2, D3 = 40, 24, 13               # fc1 / fc2 / fc3 logical output dims
DF = 128                              # padded FC / output lane width


def _round_up(x, m):
    return ((x + m - 1) // m) * m


def _pick_bn(n):
    """Batch block size: multiple of 128, sized for the target MXU / TC count."""
    try:
        kind = jax.devices()[0].device_kind.lower()
    except Exception:  # pragma: no cover
        kind = ""
    if "v5" in kind:
        cap = 128                       # v5e MXU is 4x128^2: M=128 already fills a pass
    elif n >= 1024:
        cap = 512                       # plenty of VMEM headroom on v6e/v7x
    else:
        cap = 256                       # fill the 256-wide MXU on v6e/v7x
    bn = min(_round_up(max(n, 1), 128), cap)
    if "v7" in kind and n > 128:
        # v7x has 2 TensorCores: make the "parallel" batch axis span >= 2 grid steps,
        # but never shrink below 128 rows.
        bn = max(128, min(bn, _round_up((n + 1) // 2, 128)))
    return bn


# ---------------------------------------------------------------------------
# Fused Pallas kernel: entire NetB forward on one batch block.
# ---------------------------------------------------------------------------
def _netb_kernel(x_ref, m1_ref, b1_ref, m2_ref, b2_ref,
                 fw1_ref, fb1_ref, fw2_ref, fb2_ref, fw3_ref, fb3_ref, o_ref):
    x = x_ref[...]                                                     # (bn, 256) bf16

    # ---- conv1 (one bf16 matmul) + maxpool2x2 (max of 4 lane-aligned slices) + bias + relu
    y = jnp.dot(x, m1_ref[...], preferred_element_type=jnp.float32)   # (bn, 4*G1) f32
    y = jnp.maximum(jnp.maximum(y[:, 0:G1],          y[:, G1:2 * G1]),
                    jnp.maximum(y[:, 2 * G1:3 * G1], y[:, 3 * G1:4 * G1]))
    y = jnp.maximum(y + b1_ref[...], 0.0).astype(jnp.bfloat16)         # (bn, G1)

    # ---- conv2 + maxpool2x2 + bias + relu ----
    y = jnp.dot(y, m2_ref[...], preferred_element_type=jnp.float32)   # (bn, 4*G2) f32
    y = jnp.maximum(jnp.maximum(y[:, 0:G2],          y[:, G2:2 * G2]),
                    jnp.maximum(y[:, 2 * G2:3 * G2], y[:, 3 * G2:4 * G2]))
    y = jnp.maximum(y + b2_ref[...], 0.0).astype(jnp.bfloat16)         # (bn, G2)

    # ---- fc1 -> relu -> fc2 -> relu -> fc3 (all lane-padded to 128) ----
    y = jnp.maximum(jnp.dot(y, fw1_ref[...], preferred_element_type=jnp.float32)
                    + fb1_ref[...], 0.0).astype(jnp.bfloat16)
    y = jnp.maximum(jnp.dot(y, fw2_ref[...], preferred_element_type=jnp.float32)
                    + fb2_ref[...], 0.0).astype(jnp.bfloat16)
    o_ref[...] = jnp.dot(y, fw3_ref[...], preferred_element_type=jnp.float32) + fb3_ref[...]


# ---------------------------------------------------------------------------
# One-time parameter lowering: unroll the tiny convs into dense matrices whose
# output columns are grouped by 2x2 pool window position (lane-padded to 128s).
# Matmul weights are cast to bf16; biases stay f32.
# ---------------------------------------------------------------------------
def lower_params(params):
    w1, b1, w2, b2, fw1, fb1, fw2, fb2, fw3, fb3 = [np.asarray(p, np.float32) for p in params]

    # conv1 (1 -> 6, 3x3) on 14x14 -> pooled output order (py, px, c); group j = pool pos.
    M1 = np.zeros((KPAD, 4 * G1), np.float32)        # rows 196..255 are zero (input padding)
    B1 = np.zeros((1, G1), np.float32)
    for jy in range(2):
        for jx in range(2):
            j = jy * 2 + jx
            for py in range(PH1):
                for px in range(PW1):
                    oy, ox = 2 * py + jy, 2 * px + jx
                    for c in range(C1):
                        col = j * G1 + (py * PW1 + px) * C1 + c
                        for dy in range(3):
                            for dx in range(3):
                                M1[(oy + dy) * IN_W + (ox + dx), col] = w1[c, 0, dy, dx]
    for py in range(PH1):
        for px in range(PW1):
            for c in range(C1):
                B1[0, (py * PW1 + px) * C1 + c] = b1[c]

    # conv2 (6 -> 16, 3x3) on the 6x6x6 pooled-1 map (rows 216..255 are zero padding).
    M2 = np.zeros((G1, 4 * G2), np.float32)
    B2 = np.zeros((1, G2), np.float32)
    for jy in range(2):
        for jx in range(2):
            j = jy * 2 + jx
            for py in range(PH2):
                for px in range(PW2):
                    oy, ox = 2 * py + jy, 2 * px + jx
                    for f in range(C2):
                        col = j * G2 + (py * PW2 + px) * C2 + f
                        for c in range(C1):
                            for dy in range(3):
                                for dx in range(3):
                                    row = ((oy + dy) * PW1 + (ox + dx)) * C1 + c
                                    M2[row, col] = w2[f, c, dy, dx]
    for py in range(PH2):
        for px in range(PW2):
            for f in range(C2):
                B2[0, (py * PW2 + px) * C2 + f] = b2[f]

    # fc1: permute rows from kernel (h, w, c) order to torch's (c, h, w) flatten; pad to 128.
    FW1 = np.zeros((DF, DF), np.float32)
    for h in range(2):
        for w in range(2):
            for c in range(C2):
                FW1[(h * 2 + w) * C2 + c, :D1] = fw1[c * 4 + h * 2 + w, :]
    FB1 = np.zeros((1, DF), np.float32); FB1[0, :D1] = fb1

    FW2 = np.zeros((DF, DF), np.float32); FW2[:D1, :D2] = fw2
    FB2 = np.zeros((1, DF), np.float32);  FB2[0, :D2] = fb2
    FW3 = np.zeros((DF, DF), np.float32); FW3[:D2, :D3] = fw3
    FB3 = np.zeros((1, DF), np.float32);  FB3[0, :D3] = fb3

    bf = jnp.bfloat16
    return (jnp.asarray(M1, bf), jnp.asarray(B1), jnp.asarray(M2, bf), jnp.asarray(B2),
            jnp.asarray(FW1, bf), jnp.asarray(FB1),
            jnp.asarray(FW2, bf), jnp.asarray(FB2),
            jnp.asarray(FW3, bf), jnp.asarray(FB3))


# ---------------------------------------------------------------------------
# Wrapper: single fused pallas_call, batch tiled on a parallel grid axis.
# ---------------------------------------------------------------------------
def netb_forward(x, lowered):
    m1, b1r, m2, b2r, fw1p, fb1r, fw2p, fb2r, fw3p, fb3r = lowered
    N = x.shape[0]
    xf = x.reshape(N, IN_FLAT).astype(jnp.bfloat16)

    bn = _pick_bn(N)
    n_pad = _round_up(N, bn)
    xf = jnp.pad(xf, ((0, n_pad - N), (0, KPAD - IN_FLAT)))   # lane-pad 196 -> 256
    grid = (n_pad // bn,)

    flops = 2 * n_pad * (KPAD * 4 * G1 + G1 * 4 * G2 + 3 * DF * DF)
    bytes_accessed = (2 * n_pad * KPAD + 4 * n_pad * DF                    # x (bf16) + out (f32)
                      + 2 * (KPAD * 4 * G1 + G1 * 4 * G2 + 3 * DF * DF)    # bf16 weights
                      + 4 * (G1 + G2 + 3 * DF))                            # f32 biases

    out = pl.pallas_call(
        _netb_kernel,
        out_shape=jax.ShapeDtypeStruct((n_pad, DF), jnp.float32),
        grid=grid,
        in_specs=[
            pl.BlockSpec((bn, KPAD), lambda i: (i, 0)),
            pl.BlockSpec((KPAD, 4 * G1), lambda i: (0, 0)),
            pl.BlockSpec((1, G1), lambda i: (0, 0)),
            pl.BlockSpec((G1, 4 * G2), lambda i: (0, 0)),
            pl.BlockSpec((1, G2), lambda i: (0, 0)),
            pl.BlockSpec((DF, DF), lambda i: (0, 0)),
            pl.BlockSpec((1, DF), lambda i: (0, 0)),
            pl.BlockSpec((DF, DF), lambda i: (0, 0)),
            pl.BlockSpec((1, DF), lambda i: (0, 0)),
            pl.BlockSpec((DF, DF), lambda i: (0, 0)),
            pl.BlockSpec((1, DF), lambda i: (0, 0)),
        ],
        out_specs=pl.BlockSpec((bn, DF), lambda i: (i, 0)),
        compiler_params=pltpu.CompilerParams(dimension_semantics=("parallel",)),
        cost_estimate=pl.CostEstimate(flops=flops, transcendentals=0,
                                      bytes_accessed=bytes_accessed),
    )(xf, m1, b1r, m2, b2r, fw1p, fb1r, fw2p, fb2r, fw3p, fb3r)
    return out[:N, :D3]


# ---------------------------------------------------------------------------
# Pure-JAX reference (correctness check only; f32 throughout)
# ---------------------------------------------------------------------------
def reference_forward(x, params):
    w1, b1, w2, b2, fw1, fb1, fw2, fb2, fw3, fb3 = params

    def conv(z, w, b):
        y = jax.lax.conv_general_dilated(z, w, (1, 1), 'VALID',
                                         dimension_numbers=('NCHW', 'OIHW', 'NCHW'))
        return y + b.reshape(1, -1, 1, 1)

    def pool(z):
        return jax.lax.reduce_window(z, -jnp.inf, jax.lax.max,
                                     (1, 1, 2, 2), (1, 1, 2, 2), 'VALID')

    y = pool(jax.nn.relu(conv(x, w1, b1)))
    y = pool(jax.nn.relu(conv(y, w2, b2)))
    y = y.reshape(x.shape[0], -1)                 # (C, H, W) flatten, like torch .view
    y = jax.nn.relu(y @ fw1 + fb1)
    y = jax.nn.relu(y @ fw2 + fb2)
    return y @ fw3 + fb3


def init_params(key):
    ks = jax.random.split(key, 10)
    s = 0.1
    return (
        jax.random.normal(ks[0], (C1, 1, 3, 3), jnp.float32) * s,    # conv1.weight (OIHW)
        jax.random.normal(ks[1], (C1,), jnp.float32) * s,            # conv1.bias
        jax.random.normal(ks[2], (C2, C1, 3, 3), jnp.float32) * s,   # conv2.weight
        jax.random.normal(ks[3], (C2,), jnp.float32) * s,            # conv2.bias
        jax.random.normal(ks[4], (64, D1), jnp.float32) * s,         # fc1 (in, out)
        jax.random.normal(ks[5], (D1,), jnp.float32) * s,
        jax.random.normal(ks[6], (D1, D2), jnp.float32) * s,         # fc2
        jax.random.normal(ks[7], (D2,), jnp.float32) * s,
        jax.random.normal(ks[8], (D2, D3), jnp.float32) * s,         # fc3 (24 -> 13)
        jax.random.normal(ks[9], (D3,), jnp.float32) * s,
    )


if __name__ == "__main__":
    key = jax.random.PRNGKey(0)
    kx, kx2, kp = jax.random.split(key, 3)
    params = init_params(kp)
    lowered = lower_params(params)
    fwd = jax.jit(netb_forward)

    # Small-batch check (input consistent with fc1 = 16*2*2: (N, 1, 14, 14)).
    x = jax.random.normal(kx, (2, 1, 14, 14), jnp.float32)
    out = jax.block_until_ready(fwd(x, lowered))
    assert out.shape == (2, D3), out.shape
    ref = jax.block_until_ready(reference_forward(x, params))
    # bf16 weights/activations vs f32 reference -> relaxed tolerance.
    np.testing.assert_allclose(np.asarray(out), np.asarray(ref), atol=3e-2, rtol=3e-2)

    # Larger batch: exercises the multi-step "parallel" grid and padded batch rows.
    x2 = jax.random.normal(kx2, (300, 1, 14, 14), jnp.float32)
    out2 = jax.block_until_ready(fwd(x2, lowered))
    assert out2.shape == (300, D3), out2.shape
    ref2 = jax.block_until_ready(reference_forward(x2, params))
    np.testing.assert_allclose(np.asarray(out2), np.asarray(ref2), atol=3e-2, rtol=3e-2)

    print("KERNEL_OK")
</pallas_src>

<mosaic_0001>
module attributes {stable_mosaic.version = 11 : i64} {
  func.func @_netb_kernel(%arg0: i32, %arg1: memref<128x256xbf16, #tpu.memory_space<vmem>>, %arg2: memref<256x1024xbf16, #tpu.memory_space<vmem>>, %arg3: memref<1x256xf32, #tpu.memory_space<vmem>>, %arg4: memref<256x512xbf16, #tpu.memory_space<vmem>>, %arg5: memref<1x128xf32, #tpu.memory_space<vmem>>, %arg6: memref<128x128xbf16, #tpu.memory_space<vmem>>, %arg7: memref<1x128xf32, #tpu.memory_space<vmem>>, %arg8: memref<128x128xbf16, #tpu.memory_space<vmem>>, %arg9: memref<1x128xf32, #tpu.memory_space<vmem>>, %arg10: memref<128x128xbf16, #tpu.memory_space<vmem>>, %arg11: memref<1x128xf32, #tpu.memory_space<vmem>>, %arg12: memref<128x128xf32, #tpu.memory_space<vmem>>) attributes {dimension_semantics = [#tpu.dimension_semantics<parallel>], iteration_bounds = array<i64: 1>, scalar_prefetch = 0 : i64, scratch_operands = 0 : i64, tpu.core_type = #tpu.core_type<tc>, window_params = [{transform_indices = @transform_0, window_bounds = array<i64: 128, 256>}, {pipeline_mode = #tpu.pipeline_mode<synchronous>, transform_indices = @transform_1, window_bounds = array<i64: 256, 1024>}, {pipeline_mode = #tpu.pipeline_mode<synchronous>, transform_indices = @transform_2, window_bounds = array<i64: 1, 256>}, {pipeline_mode = #tpu.pipeline_mode<synchronous>, transform_indices = @transform_3, window_bounds = array<i64: 256, 512>}, {pipeline_mode = #tpu.pipeline_mode<synchronous>, transform_indices = @transform_4, window_bounds = array<i64: 1, 128>}, {pipeline_mode = #tpu.pipeline_mode<synchronous>, transform_indices = @transform_5, window_bounds = array<i64: 128, 128>}, {pipeline_mode = #tpu.pipeline_mode<synchronous>, transform_indices = @transform_6, window_bounds = array<i64: 1, 128>}, {pipeline_mode = #tpu.pipeline_mode<synchronous>, transform_indices = @transform_7, window_bounds = array<i64: 128, 128>}, {pipeline_mode = #tpu.pipeline_mode<synchronous>, transform_indices = @transform_8, window_bounds = array<i64: 1, 128>}, {pipeline_mode = #tpu.pipeline_mode<synchronous>, transform_indices = @transform_9, window_bounds = array<i64: 128, 128>}, {pipeline_mode = #tpu.pipeline_mode<synchronous>, transform_indices = @transform_10, window_bounds = array<i64: 1, 128>}, {transform_indices = @transform_11, window_bounds = array<i64: 128, 128>}]} {
    %c0 = arith.constant 0 : index
    %c0_0 = arith.constant 0 : index
    %0 = vector.load %arg1[%c0, %c0_0] : memref<128x256xbf16, #tpu.memory_space<vmem>>, vector<128x256xbf16>
    %c0_1 = arith.constant 0 : index
    %c0_2 = arith.constant 0 : index
    %1 = vector.load %arg2[%c0_1, %c0_2] : memref<256x1024xbf16, #tpu.memory_space<vmem>>, vector<256x1024xbf16>
    %cst = arith.constant dense<0.000000e+00> : vector<128x1024xf32>
    %2 = tpu.matmul %0, %1, %cst {dimension_numbers = #tpu.dot_dimension_numbers<[1], [0], [0], [1], [0, 0, 1, 1], [], []>} : vector<128x256xbf16>, vector<256x1024xbf16>, vector<128x1024xf32> -> vector<128x1024xf32>
    %3 = vector.extract_strided_slice %2 {offsets = [0, 0], sizes = [128, 256], strides = [1, 1]} : vector<128x1024xf32> to vector<128x256xf32>
    %4 = vector.extract_strided_slice %2 {offsets = [0, 256], sizes = [128, 256], strides = [1, 1]} : vector<128x1024xf32> to vector<128x256xf32>
    %5 = arith.maximumf %3, %4 : vector<128x256xf32>
    %6 = vector.extract_strided_slice %2 {offsets = [0, 512], sizes = [128, 256], strides = [1, 1]} : vector<128x1024xf32> to vector<128x256xf32>
    %7 = vector.extract_strided_slice %2 {offsets = [0, 768], sizes = [128, 256], strides = [1, 1]} : vector<128x1024xf32> to vector<128x256xf32>
    %8 = arith.maximumf %6, %7 : vector<128x256xf32>
    %9 = arith.maximumf %5, %8 : vector<128x256xf32>
    %c0_3 = arith.constant 0 : index
    %c0_4 = arith.constant 0 : index
    %10 = vector.load %arg3[%c0_3, %c0_4] : memref<1x256xf32, #tpu.memory_space<vmem>>, vector<1x256xf32>
    %11 = vector.broadcast %10 : vector<1x256xf32> to vector<128x256xf32>
    %12 = arith.addf %9, %11 : vector<128x256xf32>
    %cst_5 = arith.constant 0.000000e+00 : f32
    %13 = vector.broadcast %cst_5 : f32 to vector<128x256xf32>
    %14 = arith.maximumf %12, %13 : vector<128x256xf32>
    %15 = arith.truncf %14 : vector<128x256xf32> to vector<128x256xbf16>
    %c0_6 = arith.constant 0 : index
    %c0_7 = arith.constant 0 : index
    %16 = vector.load %arg4[%c0_6, %c0_7] : memref<256x512xbf16, #tpu.memory_space<vmem>>, vector<256x512xbf16>
    %cst_8 = arith.constant dense<0.000000e+00> : vector<128x512xf32>
    %17 = tpu.matmul %15, %16, %cst_8 {dimension_numbers = #tpu.dot_dimension_numbers<[1], [0], [0], [1], [0, 0, 1, 1], [], []>} : vector<128x256xbf16>, vector<256x512xbf16>, vector<128x512xf32> -> vector<128x512xf32>
    %18 = vector.extract_strided_slice %17 {offsets = [0, 0], sizes = [128, 128], strides = [1, 1]} : vector<128x512xf32> to vector<128x128xf32>
    %19 = vector.extract_strided_slice %17 {offsets = [0, 128], sizes = [128, 128], strides = [1, 1]} : vector<128x512xf32> to vector<128x128xf32>
    %20 = arith.maximumf %18, %19 : vector<128x128xf32>
    %21 = vector.extract_strided_slice %17 {offsets = [0, 256], sizes = [128, 128], strides = [1, 1]} : vector<128x512xf32> to vector<128x128xf32>
    %22 = vector.extract_strided_slice %17 {offsets = [0, 384], sizes = [128, 128], strides = [1, 1]} : vector<128x512xf32> to vector<128x128xf32>
    %23 = arith.maximumf %21, %22 : vector<128x128xf32>
    %24 = arith.maximumf %20, %23 : vector<128x128xf32>
    %c0_9 = arith.constant 0 : index
    %c0_10 = arith.constant 0 : index
    %25 = vector.load %arg5[%c0_9, %c0_10] : memref<1x128xf32, #tpu.memory_space<vmem>>, vector<1x128xf32>
    %26 = vector.broadcast %25 : vector<1x128xf32> to vector<128x128xf32>
    %27 = arith.addf %24, %26 : vector<128x128xf32>
    %cst_11 = arith.constant 0.000000e+00 : f32
    %28 = vector.broadcast %cst_11 : f32 to vector<128x128xf32>
    %29 = arith.maximumf %27, %28 : vector<128x128xf32>
    %30 = arith.truncf %29 : vector<128x128xf32> to vector<128x128xbf16>
    %c0_12 = arith.constant 0 : index
    %c0_13 = arith.constant 0 : index
    %31 = vector.load %arg6[%c0_12, %c0_13] : memref<128x128xbf16, #tpu.memory_space<vmem>>, vector<128x128xbf16>
    %cst_14 = arith.constant dense<0.000000e+00> : vector<128x128xf32>
    %32 = tpu.matmul %30, %31, %cst_14 {dimension_numbers = #tpu.dot_dimension_numbers<[1], [0], [0], [1], [0, 0, 1, 1], [], []>} : vector<128x128xbf16>, vector<128x128xbf16>, vector<128x128xf32> -> vector<128x128xf32>
    %c0_15 = arith.constant 0 : index
    %c0_16 = arith.constant 0 : index
    %33 = vector.load %arg7[%c0_15, %c0_16] : memref<1x128xf32, #tpu.memory_space<vmem>>, vector<1x128xf32>
    %34 = vector.broadcast %33 : vector<1x128xf32> to vector<128x128xf32>
    %35 = arith.addf %32, %34 : vector<128x128xf32>
    %cst_17 = arith.constant 0.000000e+00 : f32
    %36 = vector.broadcast %cst_17 : f32 to vector<128x128xf32>
    %37 = arith.maximumf %35, %36 : vector<128x128xf32>
    %38 = arith.truncf %37 : vector<128x128xf32> to vector<128x128xbf16>
    %c0_18 = arith.constant 0 : index
    %c0_19 = arith.constant 0 : index
    %39 = vector.load %arg8[%c0_18, %c0_19] : memref<128x128xbf16, #tpu.memory_space<vmem>>, vector<128x128xbf16>
    %cst_20 = arith.constant dense<0.000000e+00> : vector<128x128xf32>
    %40 = tpu.matmul %38, %39, %cst_20 {dimension_numbers = #tpu.dot_dimension_numbers<[1], [0], [0], [1], [0, 0, 1, 1], [], []>} : vector<128x128xbf16>, vector<128x128xbf16>, vector<128x128xf32> -> vector<128x128xf32>
    %c0_21 = arith.constant 0 : index
    %c0_22 = arith.constant 0 : index
    %41 = vector.load %arg9[%c0_21, %c0_22] : memref<1x128xf32, #tpu.memory_space<vmem>>, vector<1x128xf32>
    %42 = vector.broadcast %41 : vector<1x128xf32> to vector<128x128xf32>
    %43 = arith.addf %40, %42 : vector<128x128xf32>
    %cst_23 = arith.constant 0.000000e+00 : f32
    %44 = vector.broadcast %cst_23 : f32 to vector<128x128xf32>
    %45 = arith.maximumf %43, %44 : vector<128x128xf32>
    %46 = arith.truncf %45 : vector<128x128xf32> to vector<128x128xbf16>
    %c0_24 = arith.constant 0 : index
    %c0_25 = arith.constant 0 : index
    %47 = vector.load %arg10[%c0_24, %c0_25] : memref<128x128xbf16, #tpu.memory_space<vmem>>, vector<128x128xbf16>
    %cst_26 = arith.constant dense<0.000000e+00> : vector<128x128xf32>
    %48 = tpu.matmul %46, %47, %cst_26 {dimension_numbers = #tpu.dot_dimension_numbers<[1], [0], [0], [1], [0, 0, 1, 1], [], []>} : vector<128x128xbf16>, vector<128x128xbf16>, vector<128x128xf32> -> vector<128x128xf32>
    %c0_27 = arith.constant 0 : index
    %c0_28 = arith.constant 0 : index
    %49 = vector.load %arg11[%c0_27, %c0_28] : memref<1x128xf32, #tpu.memory_space<vmem>>, vector<1x128xf32>
    %50 = vector.broadcast %49 : vector<1x128xf32> to vector<128x128xf32>
    %51 = arith.addf %48, %50 : vector<128x128xf32>
    %c0_29 = arith.constant 0 : index
    %c0_30 = arith.constant 0 : index
    %52 = vector.load %arg12[%c0_29, %c0_30] : memref<128x128xf32, #tpu.memory_space<vmem>>, vector<128x128xf32>
    tpu.vector_store %arg12[%c0_29, %c0_30], %51 {strides = array<i32>} : memref<128x128xf32, #tpu.memory_space<vmem>>, vector<128x128xf32>,
    return
  }
  func.func @transform_0(%arg0: i32) -> (i32, i32) {
    %c0_i32 = arith.constant 0 : i32
    %c0_i32_0 = arith.constant 0 : i32
    return %arg0, %c0_i32 : i32, i32
  }
  func.func @transform_1(%arg0: i32) -> (i32, i32) {
    %c0_i32 = arith.constant 0 : i32
    %c0_i32_0 = arith.constant 0 : i32
    %c0_i32_1 = arith.constant 0 : i32
    return %c0_i32, %c0_i32_0 : i32, i32
  }
  func.func @transform_2(%arg0: i32) -> (i32, i32) {
    %c0_i32 = arith.constant 0 : i32
    %c0_i32_0 = arith.constant 0 : i32
    %c0_i32_1 = arith.constant 0 : i32
    return %c0_i32, %c0_i32_0 : i32, i32
  }
  func.func @transform_3(%arg0: i32) -> (i32, i32) {
    %c0_i32 = arith.constant 0 : i32
    %c0_i32_0 = arith.constant 0 : i32
    %c0_i32_1 = arith.constant 0 : i32
    return %c0_i32, %c0_i32_0 : i32, i32
  }
  func.func @transform_4(%arg0: i32) -> (i32, i32) {
    %c0_i32 = arith.constant 0 : i32
    %c0_i32_0 = arith.constant 0 : i32
    %c0_i32_1 = arith.constant 0 : i32
    return %c0_i32, %c0_i32_0 : i32, i32
  }
  func.func @transform_5(%arg0: i32) -> (i32, i32) {
    %c0_i32 = arith.constant 0 : i32
    %c0_i32_0 = arith.constant 0 : i32
    %c0_i32_1 = arith.constant 0 : i32
    return %c0_i32, %c0_i32_0 : i32, i32
  }
  func.func @transform_6(%arg0: i32) -> (i32, i32) {
    %c0_i32 = arith.constant 0 : i32
    %c0_i32_0 = arith.constant 0 : i32
    %c0_i32_1 = arith.constant 0 : i32
    return %c0_i32, %c0_i32_0 : i32, i32
  }
  func.func @transform_7(%arg0: i32) -> (i32, i32) {
    %c0_i32 = arith.constant 0 : i32
    %c0_i32_0 = arith.constant 0 : i32
    %c0_i32_1 = arith.constant 0 : i32
    return %c0_i32, %c0_i32_0 : i32, i32
  }
  func.func @transform_8(%arg0: i32) -> (i32, i32) {
    %c0_i32 = arith.constant 0 : i32
    %c0_i32_0 = arith.constant 0 : i32
    %c0_i32_1 = arith.constant 0 : i32
    return %c0_i32, %c0_i32_0 : i32, i32
  }
  func.func @transform_9(%arg0: i32) -> (i32, i32) {
    %c0_i32 = arith.constant 0 : i32
    %c0_i32_0 = arith.constant 0 : i32
    %c0_i32_1 = arith.constant 0 : i32
    return %c0_i32, %c0_i32_0 : i32, i32
  }
  func.func @transform_10(%arg0: i32) -> (i32, i32) {
    %c0_i32 = arith.constant 0 : i32
    %c0_i32_0 = arith.constant 0 : i32
    %c0_i32_1 = arith.constant 0 : i32
    return %c0_i32, %c0_i32_0 : i32, i32
  }
  func.func @transform_11(%arg0: i32) -> (i32, i32) {
    %c0_i32 = arith.constant 0 : i32
    %c0_i32_0 = arith.constant 0 : i32
    return %arg0, %c0_i32 : i32, i32
  }
}

</mosaic_0001>

<llo_original>
// kernel: netb_forward.1
$region0: #{netb_forward.1}
  #allocation0 [shape = 'u32[]', space=smem, size = 0x4, offset = 0x4, fixed_abs, tag = 'smem constant byte address 0x4 - core index']
  #allocation1 [shape = 'u32[144,128]{1,0:T(1,128)}', space=vmem, size = 0x12000, scoped, tag = 'internal scratch']
  %s0 = inlined_call_operand.vmem [shape: bf16[128,256], index: 0, kind: input, shape index: {}]
  %s1 = inlined_call_operand.hbm [shape: bf16[256,1024], index: 1, kind: input, shape index: {}]
  %s2 = inlined_call_operand.vmem [shape: f32[1,256], index: 2, kind: input, shape index: {}]
  %s3 = inlined_call_operand.hbm [shape: bf16[256,512], index: 3, kind: input, shape index: {}]
  %s4 = inlined_call_operand.vmem [shape: f32[1,128], index: 4, kind: input, shape index: {}]
  %s5 = inlined_call_operand.vmem [shape: bf16[128,128], index: 5, kind: input, shape index: {}]
  %s6 = inlined_call_operand.vmem [shape: f32[1,128], index: 6, kind: input, shape index: {}]
  %s7 = inlined_call_operand.vmem [shape: bf16[128,128], index: 7, kind: input, shape index: {}]
  %s8 = inlined_call_operand.vmem [shape: f32[1,128], index: 8, kind: input, shape index: {}]
  %s9 = inlined_call_operand.vmem [shape: bf16[128,128], index: 9, kind: input, shape index: {}]
  %s10 = inlined_call_operand.vmem [shape: f32[1,128], index: 10, kind: input, shape index: {}]
  %s11 = inlined_call_operand.vmem [shape: f32[128,128], index: 11, kind: output, shape index: {}]
  %s12 = sld [smem:[#allocation0]]
  $region62: #{netb_forward.1} parent=0
    _
  %s14 = ssub.s32 1, %s12
  %s15 = scalar_select 0, %s14, %s12
  $region1: #{netb_forward.1} parent=0
    #allocation2 [shape = 'u8[524288]{0}', space=vmem, size = 0x80000, scoped, tag = 'input window, operand 1, single buffered']
    #allocation3 [shape = 's32[1]{0}', space=sflag, size = 0x4, scoped, tag = 'scoped memory for netb_forward.1']
    #allocation4 [shape = 'u8[262144]{0}', space=vmem, size = 0x40000, scoped, tag = 'input window, operand 3, single buffered']
    #allocation5 [shape = 's32[1]{0}', space=sflag, size = 0x4, scoped, tag = 'scoped memory for netb_forward.1']
    %16 = vsyncpa [#allocation3], 0
    %17 = vsyncpa [#allocation5], 0
    // Predicated region
    $region2: #{netb_forward.1} parent=1 // pred_check
      _
    $region3: #{netb_forward.1} parent=1 // pred_check_branch
      %19 = sbr.rel (0) target = $region5
    $region4: #{netb_forward.1} parent=1 // pred_region
      _
    $region5: #{netb_forward.1} parent=1 // pred_fallthru
      _
    // Predicated region
    $region6: #{netb_forward.1} parent=1 // pred_check
      _
    $region7: #{netb_forward.1} parent=1 // pred_check_branch
      %21 = sbr.rel (0) target = $region9
    $region8: #{netb_forward.1} parent=1 // pred_region
      %s23 = ssub.s32 16384, 16384
      %24 = vsyncadd [#allocation3], %s23
      %s25 = sshll.u32 [#allocation2], 4
      %s26 = int_to_ptr.vmem [resolvable:$true] %s25
      %31 = dma.hbm_to_vmem [thread:$0]  %s1, 16384, %s26, [#allocation3], 512, 512, 32
    $region9: #{netb_forward.1} parent=1 // pred_fallthru
      _
    // Predicated region
    $region10: #{netb_forward.1} parent=1 // pred_check
      _
    $region11: #{netb_forward.1} parent=1 // pred_check_branch
      %33 = sbr.rel (0) target = $region13
    $region12: #{netb_forward.1} parent=1 // pred_region
      _
    $region13: #{netb_forward.1} parent=1 // pred_fallthru
      _
    // Predicated region
    $region14: #{netb_forward.1} parent=1 // pred_check
      _
    $region15: #{netb_forward.1} parent=1 // pred_check_branch
      %35 = sbr.rel (0) target = $region17
    $region16: #{netb_forward.1} parent=1 // pred_region
      %s37 = ssub.s32 8192, 8192
      %38 = vsyncadd [#allocation5], %s37
      %s39 = sshll.u32 [#allocation4], 4
      %s40 = int_to_ptr.vmem [resolvable:$true] %s39
      %45 = dma.hbm_to_vmem [thread:$0]  %s3, 8192, %s40, [#allocation5], 256, 256, 16
    $region17: #{netb_forward.1} parent=1 // pred_fallthru
      _
    // Predicated region
    $region18: #{netb_forward.1} parent=1 // pred_check
      _
    $region19: #{netb_forward.1} parent=1 // pred_check_branch
      %47 = sbr.rel (0) target = $region21
    $region20: #{netb_forward.1} parent=1 // pred_region
      _
    $region21: #{netb_forward.1} parent=1 // pred_fallthru
      _
    // Predicated region
    $region22: #{netb_forward.1} parent=1 // pred_check
      _
    $region23: #{netb_forward.1} parent=1 // pred_check_branch
      %49 = sbr.rel (0) target = $region25
    $region24: #{netb_forward.1} parent=1 // pred_region
      _
    $region25: #{netb_forward.1} parent=1 // pred_fallthru
      _
    // Predicated region
    $region26: #{netb_forward.1} parent=1 // pred_check
      _
    $region27: #{netb_forward.1} parent=1 // pred_check_branch
      %51 = sbr.rel (0) target = $region29
    $region28: #{netb_forward.1} parent=1 // pred_region
      _
    $region29: #{netb_forward.1} parent=1 // pred_fallthru
      _
    // Predicated region
    $region30: #{netb_forward.1} parent=1 // pred_check
      _
    $region31: #{netb_forward.1} parent=1 // pred_check_branch
      %53 = sbr.rel (0) target = $region33
    $region32: #{netb_forward.1} parent=1 // pred_region
      _
    $region33: #{netb_forward.1} parent=1 // pred_fallthru
      _
    // Predicated region
    $region34: #{netb_forward.1} parent=1 // pred_check
      _
    $region35: #{netb_forward.1} parent=1 // pred_check_branch
      %55 = sbr.rel (0) target = $region37
    $region36: #{netb_forward.1} parent=1 // pred_region
      _
    $region37: #{netb_forward.1} parent=1 // pred_fallthru
      _
    // Predicated region
    $region38: #{netb_forward.1} parent=1 // pred_check
      _
    $region39: #{netb_forward.1} parent=1 // pred_check_branch
      %57 = sbr.rel (0) target = $region41
    $region40: #{netb_forward.1} parent=1 // pred_region
      _
    $region41: #{netb_forward.1} parent=1 // pred_fallthru
      _
    // Predicated region
    $region42: #{netb_forward.1} parent=1 // pred_check
      _
    $region43: #{netb_forward.1} parent=1 // pred_check_branch
      %59 = sbr.rel (0) target = $region45
    $region44: #{netb_forward.1} parent=1 // pred_region
      _
    $region45: #{netb_forward.1} parent=1 // pred_fallthru
      _
    // Predicated region
    $region46: #{netb_forward.1} parent=1 // pred_check
      _
    $region47: #{netb_forward.1} parent=1 // pred_check_branch
      %61 = sbr.rel (0) target = $region49
    $region48: #{netb_forward.1} parent=1 // pred_region
      %62 = dma.done [#allocation3], 16384
    $region49: #{netb_forward.1} parent=1 // pred_fallthru
      _
    // Predicated region
    $region50: #{netb_forward.1} parent=1 // pred_check
      _
    $region51: #{netb_forward.1} parent=1 // pred_check_branch
      %64 = sbr.rel (0) target = $region53
    $region52: #{netb_forward.1} parent=1 // pred_region
      %65 = dma.done [#allocation5], 8192
    $region53: #{netb_forward.1} parent=1 // pred_fallthru
      _
    %v67 = vld [vmem:[%s0] sm:$0xff]
    %v68 = vld [vmem:[%s0 + $0x8] sm:$0xff]
    %v69 = vld [vmem:[%s0 + $0x10] sm:$0xff]
    %v70 = vld [vmem:[%s0 + $0x18] sm:$0xff]
    %v71 = vld [vmem:[%s0 + $0x20] sm:$0xff]
    %v72 = vld [vmem:[%s0 + $0x28] sm:$0xff]
    %v73 = vld [vmem:[%s0 + $0x30] sm:$0xff]
    %v74 = vld [vmem:[%s0 + $0x38] sm:$0xff]
    %v75 = vld [vmem:[%s0 + $0x40] sm:$0xff]
    %v76 = vld [vmem:[%s0 + $0x48] sm:$0xff]
    %v77 = vld [vmem:[%s0 + $0x50] sm:$0xff]
    %v78 = vld [vmem:[%s0 + $0x58] sm:$0xff]
    %v79 = vld [vmem:[%s0 + $0x60] sm:$0xff]
    %v80 = vld [vmem:[%s0 + $0x68] sm:$0xff]
    %v81 = vld [vmem:[%s0 + $0x70] sm:$0xff]
    %v82 = vld [vmem:[%s0 + $0x78] sm:$0xff]
    %v83 = vld [vmem:[#allocation2] sm:$0xff]
    %v84 = vld [vmem:[#allocation2 + $0x8] sm:$0xff]
    %v85 = vld [vmem:[#allocation2 + $0x10] sm:$0xff]
    %v86 = vld [vmem:[#allocation2 + $0x18] sm:$0xff]
    %v87 = vld [vmem:[#allocation2 + $0x20] sm:$0xff]
    %v88 = vld [vmem:[#allocation2 + $0x28] sm:$0xff]
    %v89 = vld [vmem:[#allocation2 + $0x30] sm:$0xff]
    %v90 = vld [vmem:[#allocation2 + $0x38] sm:$0xff]
    %v91 = vld [vmem:[#allocation2 + $0x40] sm:$0xff]
    %v92 = vld [vmem:[#allocation2 + $0x48] sm:$0xff]
    %v93 = vld [vmem:[#allocation2 + $0x50] sm:$0xff]
    %v94 = vld [vmem:[#allocation2 + $0x58] sm:$0xff]
    %v95 = vld [vmem:[#allocation2 + $0x60] sm:$0xff]
    %v96 = vld [vmem:[#allocation2 + $0x68] sm:$0xff]
    %v97 = vld [vmem:[#allocation2 + $0x70] sm:$0xff]
    %v98 = vld [vmem:[#allocation2 + $0x78] sm:$0xff]
    %v99 = vld [vmem:[#allocation2 + $0x80] sm:$0xff]
    %v100 = vld [vmem:[#allocation2 + $0x88] sm:$0xff]
    %v101 = vld [vmem:[#allocation2 + $0x90] sm:$0xff]
    %v102 = vld [vmem:[#allocation2 + $0x98] sm:$0xff]
    %v103 = vld [vmem:[#allocation2 + $0xa0] sm:$0xff]
    %v104 = vld [vmem:[#allocation2 + $0xa8] sm:$0xff]
    %v105 = vld [vmem:[#allocation2 + $0xb0] sm:$0xff]
    %v106 = vld [vmem:[#allocation2 + $0xb8] sm:$0xff]
    %v107 = vld [vmem:[#allocation2 + $0xc0] sm:$0xff]
    %v108 = vld [vmem:[#allocation2 + $0xc8] sm:$0xff]
    %v109 = vld [vmem:[#allocation2 + $0xd0] sm:$0xff]
    %v110 = vld [vmem:[#allocation2 + $0xd8] sm:$0xff]
    %v111 = vld [vmem:[#allocation2 + $0xe0] sm:$0xff]
    %v112 = vld [vmem:[#allocation2 + $0xe8] sm:$0xff]
    %v113 = vld [vmem:[#allocation2 + $0xf0] sm:$0xff]
    %v114 = vld [vmem:[#allocation2 + $0xf8] sm:$0xff]
    %v115 = vld [vmem:[#allocation2 + $0x100] sm:$0xff]
    %v116 = vld [vmem:[#allocation2 + $0x108] sm:$0xff]
    %v117 = vld [vmem:[#allocation2 + $0x110] sm:$0xff]
    %v118 = vld [vmem:[#allocation2 + $0x118] sm:$0xff]
    %v119 = vld [vmem:[#allocation2 + $0x120] sm:$0xff]
    %v120 = vld [vmem:[#allocation2 + $0x128] sm:$0xff]
    %v121 = vld [vmem:[#allocation2 + $0x130] sm:$0xff]
    %v122 = vld [vmem:[#allocation2 + $0x138] sm:$0xff]
    %v123 = vld [vmem:[#allocation2 + $0x140] sm:$0xff]
    %v124 = vld [vmem:[#allocation2 + $0x148] sm:$0xff]
    %v125 = vld [vmem:[#allocation2 + $0x150] sm:$0xff]
    %v126 = vld [vmem:[#allocation2 + $0x158] sm:$0xff]
    %v127 = vld [vmem:[#allocation2 + $0x160] sm:$0xff]
    %v128 = vld [vmem:[#allocation2 + $0x168] sm:$0xff]
    %v129 = vld [vmem:[#allocation2 + $0x170] sm:$0xff]
    %v130 = vld [vmem:[#allocation2 + $0x178] sm:$0xff]
    %v131 = vld [vmem:[#allocation2 + $0x180] sm:$0xff]
    %v132 = vld [vmem:[#allocation2 + $0x188] sm:$0xff]
    %v133 = vld [vmem:[#allocation2 + $0x190] sm:$0xff]
    %v134 = vld [vmem:[#allocation2 + $0x198] sm:$0xff]
    %v135 = vld [vmem:[#allocation2 + $0x1a0] sm:$0xff]
    %v136 = vld [vmem:[#allocation2 + $0x1a8] sm:$0xff]
    %v137 = vld [vmem:[#allocation2 + $0x1b0] sm:$0xff]
    %v138 = vld [vmem:[#allocation2 + $0x1b8] sm:$0xff]
    %v139 = vld [vmem:[#allocation2 + $0x1c0] sm:$0xff]
    %v140 = vld [vmem:[#allocation2 + $0x1c8] sm:$0xff]
    %v141 = vld [vmem:[#allocation2 + $0x1d0] sm:$0xff]
    %v142 = vld [vmem:[#allocation2 + $0x1d8] sm:$0xff]
    %v143 = vld [vmem:[#allocation2 + $0x1e0] sm:$0xff]
    %v144 = vld [vmem:[#allocation2 + $0x1e8] sm:$0xff]
    %v145 = vld [vmem:[#allocation2 + $0x1f0] sm:$0xff]
    %v146 = vld [vmem:[#allocation2 + $0x1f8] sm:$0xff]
    %v147 = vld [vmem:[#allocation2 + $0x200] sm:$0xff]
    %v148 = vld [vmem:[#allocation2 + $0x208] sm:$0xff]
    %v149 = vld [vmem:[#allocation2 + $0x210] sm:$0xff]
    %v150 = vld [vmem:[#allocation2 + $0x218] sm:$0xff]
    %v151 = vld [vmem:[#allocation2 + $0x220] sm:$0xff]
    %v152 = vld [vmem:[#allocation2 + $0x228] sm:$0xff]
    %v153 = vld [vmem:[#allocation2 + $0x230] sm:$0xff]
    %v154 = vld [vmem:[#allocation2 + $0x238] sm:$0xff]
    %v155 = vld [vmem:[#allocation2 + $0x240] sm:$0xff]
    %v156 = vld [vmem:[#allocation2 + $0x248] sm:$0xff]
    %v157 = vld [vmem:[#allocation2 + $0x250] sm:$0xff]
    %v158 = vld [vmem:[#allocation2 + $0x258] sm:$0xff]
    %v159 = vld [vmem:[#allocation2 + $0x260] sm:$0xff]
    %v160 = vld [vmem:[#allocation2 + $0x268] sm:$0xff]
    %v161 = vld [vmem:[#allocation2 + $0x270] sm:$0xff]
    %v162 = vld [vmem:[#allocation2 + $0x278] sm:$0xff]
    %v163 = vld [vmem:[#allocation2 + $0x280] sm:$0xff]
    %v164 = vld [vmem:[#allocation2 + $0x288] sm:$0xff]
    %v165 = vld [vmem:[#allocation2 + $0x290] sm:$0xff]
    %v166 = vld [vmem:[#allocation2 + $0x298] sm:$0xff]
    %v167 = vld [vmem:[#allocation2 + $0x2a0] sm:$0xff]
    %v168 = vld [vmem:[#allocation2 + $0x2a8] sm:$0xff]
    %v169 = vld [vmem:[#allocation2 + $0x2b0] sm:$0xff]
    %v170 = vld [vmem:[#allocation2 + $0x2b8] sm:$0xff]
    %v171 = vld [vmem:[#allocation2 + $0x2c0] sm:$0xff]
    %v172 = vld [vmem:[#allocation2 + $0x2c8] sm:$0xff]
    %v173 = vld [vmem:[#allocation2 + $0x2d0] sm:$0xff]
    %v174 = vld [vmem:[#allocation2 + $0x2d8] sm:$0xff]
    %v175 = vld [vmem:[#allocation2 + $0x2e0] sm:$0xff]
    %v176 = vld [vmem:[#allocation2 + $0x2e8] sm:$0xff]
    %v177 = vld [vmem:[#allocation2 + $0x2f0] sm:$0xff]
    %v178 = vld [vmem:[#allocation2 + $0x2f8] sm:$0xff]
    %v179 = vld [vmem:[#allocation2 + $0x300] sm:$0xff]
    %v180 = vld [vmem:[#allocation2 + $0x308] sm:$0xff]
    %v181 = vld [vmem:[#allocation2 + $0x310] sm:$0xff]
    %v182 = vld [vmem:[#allocation2 + $0x318] sm:$0xff]
    %v183 = vld [vmem:[#allocation2 + $0x320] sm:$0xff]
    %v184 = vld [vmem:[#allocation2 + $0x328] sm:$0xff]
    %v185 = vld [vmem:[#allocation2 + $0x330] sm:$0xff]
    %v186 = vld [vmem:[#allocation2 + $0x338] sm:$0xff]
    %v187 = vld [vmem:[#allocation2 + $0x340] sm:$0xff]
    %v188 = vld [vmem:[#allocation2 + $0x348] sm:$0xff]
    %v189 = vld [vmem:[#allocation2 + $0x350] sm:$0xff]
    %v190 = vld [vmem:[#allocation2 + $0x358] sm:$0xff]
    %v191 = vld [vmem:[#allocation2 + $0x360] sm:$0xff]
    %v192 = vld [vmem:[#allocation2 + $0x368] sm:$0xff]
    %v193 = vld [vmem:[#allocation2 + $0x370] sm:$0xff]
    %v194 = vld [vmem:[#allocation2 + $0x378] sm:$0xff]
    %v195 = vld [vmem:[#allocation2 + $0x380] sm:$0xff]
    %v196 = vld [vmem:[#allocation2 + $0x388] sm:$0xff]
    %v197 = vld [vmem:[#allocation2 + $0x390] sm:$0xff]
    %v198 = vld [vmem:[#allocation2 + $0x398] sm:$0xff]
    %v199 = vld [vmem:[#allocation2 + $0x3a0] sm:$0xff]
    %v200 = vld [vmem:[#allocation2 + $0x3a8] sm:$0xff]
    %v201 = vld [vmem:[#allocation2 + $0x3b0] sm:$0xff]
    %v202 = vld [vmem:[#allocation2 + $0x3b8] sm:$0xff]
    %v203 = vld [vmem:[#allocation2 + $0x3c0] sm:$0xff]
    %v204 = vld [vmem:[#allocation2 + $0x3c8] sm:$0xff]
    %v205 = vld [vmem:[#allocation2 + $0x3d0] sm:$0xff]
    %v206 = vld [vmem:[#allocation2 + $0x3d8] sm:$0xff]
    %v207 = vld [vmem:[#allocation2 + $0x3e0] sm:$0xff]
    %v208 = vld [vmem:[#allocation2 + $0x3e8] sm:$0xff]
    %v209 = vld [vmem:[#allocation2 + $0x3f0] sm:$0xff]
    %v210 = vld [vmem:[#allocation2 + $0x3f8] sm:$0xff]
    %v227 = vunpack.c.l.b16 %v67
    %v228 = vunpack.c.h.b16 %v67
    %v229 = vunpack.c.l.b16 %v68
    %v230 = vunpack.c.h.b16 %v68
    %v231 = vunpack.c.l.b16 %v69
    %v232 = vunpack.c.h.b16 %v69
    %v233 = vunpack.c.l.b16 %v70
    %v234 = vunpack.c.h.b16 %v70
    %v235 = vunpack.c.l.b16 %v71
    %v236 = vunpack.c.h.b16 %v71
    %v237 = vunpack.c.l.b16 %v72
    %v238 = vunpack.c.h.b16 %v72
    %v239 = vunpack.c.l.b16 %v73
    %v240 = vunpack.c.h.b16 %v73
    %v241 = vunpack.c.l.b16 %v74
    %v242 = vunpack.c.h.b16 %v74
    %v243 = vunpack.c.l.b16 %v75
    %v244 = vunpack.c.h.b16 %v75
    %v245 = vunpack.c.l.b16 %v76
    %v246 = vunpack.c.h.b16 %v76
    %v247 = vunpack.c.l.b16 %v77
    %v248 = vunpack.c.h.b16 %v77
    %v249 = vunpack.c.l.b16 %v78
    %v250 = vunpack.c.h.b16 %v78
    %v251 = vunpack.c.l.b16 %v79
    %v252 = vunpack.c.h.b16 %v79
    %v253 = vunpack.c.l.b16 %v80
    %v254 = vunpack.c.h.b16 %v80
    %v255 = vunpack.c.l.b16 %v81
    %v256 = vunpack.c.h.b16 %v81
    %v257 = vunpack.c.l.b16 %v82
    %v258 = vunpack.c.h.b16 %v82
    %v259 = vpack.c.b16 %v229, %v227
    %v260 = vpack.c.b16 %v230, %v228
    %v261 = vpack.c.b16 %v233, %v231
    %v262 = vpack.c.b16 %v234, %v232
    %v263 = vpack.c.b16 %v237, %v235
    %v264 = vpack.c.b16 %v238, %v236
    %v265 = vpack.c.b16 %v241, %v239
    %v266 = vpack.c.b16 %v242, %v240
    %v267 = vpack.c.b16 %v245, %v243
    %v268 = vpack.c.b16 %v246, %v244
    %v269 = vpack.c.b16 %v249, %v247
    %v270 = vpack.c.b16 %v250, %v248
    %v271 = vpack.c.b16 %v253, %v251
    %v272 = vpack.c.b16 %v254, %v252
    %v273 = vpack.c.b16 %v257, %v255
    %v274 = vpack.c.b16 %v258, %v256
    %v419 = vunpack.c.l.b16 %v83
    %v420 = vunpack.c.h.b16 %v83
    %v421 = vunpack.c.l.b16 %v84
    %v422 = vunpack.c.h.b16 %v84
    %v423 = vunpack.c.l.b16 %v85
    %v424 = vunpack.c.h.b16 %v85
    %v425 = vunpack.c.l.b16 %v86
    %v426 = vunpack.c.h.b16 %v86
    %v427 = vunpack.c.l.b16 %v87
    %v428 = vunpack.c.h.b16 %v87
    %v429 = vunpack.c.l.b16 %v88
    %v430 = vunpack.c.h.b16 %v88
    %v431 = vunpack.c.l.b16 %v89
    %v432 = vunpack.c.h.b16 %v89
    %v433 = vunpack.c.l.b16 %v90
    %v434 = vunpack.c.h.b16 %v90
    %v435 = vunpack.c.l.b16 %v91
    %v436 = vunpack.c.h.b16 %v91
    %v437 = vunpack.c.l.b16 %v92
    %v438 = vunpack.c.h.b16 %v92
    %v439 = vunpack.c.l.b16 %v93
    %v440 = vunpack.c.h.b16 %v93
    %v441 = vunpack.c.l.b16 %v94
    %v442 = vunpack.c.h.b16 %v94
    %v443 = vunpack.c.l.b16 %v95
    %v444 = vunpack.c.h.b16 %v95
    %v445 = vunpack.c.l.b16 %v96
    %v446 = vunpack.c.h.b16 %v96
    %v447 = vunpack.c.l.b16 %v97
    %v448 = vunpack.c.h.b16 %v97
    %v449 = vunpack.c.l.b16 %v98
    %v450 = vunpack.c.h.b16 %v98
    %v451 = vunpack.c.l.b16 %v99
    %v452 = vunpack.c.h.b16 %v99
    %v453 = vunpack.c.l.b16 %v100
    %v454 = vunpack.c.h.b16 %v100
    %v455 = vunpack.c.l.b16 %v101
    %v456 = vunpack.c.h.b16 %v101
    %v457 = vunpack.c.l.b16 %v102
    %v458 = vunpack.c.h.b16 %v102
    %v459 = vunpack.c.l.b16 %v103
    %v460 = vunpack.c.h.b16 %v103
    %v461 = vunpack.c.l.b16 %v104
    %v462 = vunpack.c.h.b16 %v104
    %v463 = vunpack.c.l.b16 %v105
    %v464 = vunpack.c.h.b16 %v105
    %v465 = vunpack.c.l.b16 %v106
    %v466 = vunpack.c.h.b16 %v106
    %v467 = vunpack.c.l.b16 %v107
    %v468 = vunpack.c.h.b16 %v107
    %v469 = vunpack.c.l.b16 %v108
    %v470 = vunpack.c.h.b16 %v108
    %v471 = vunpack.c.l.b16 %v109
    %v472 = vunpack.c.h.b16 %v109
    %v473 = vunpack.c.l.b16 %v110
    %v474 = vunpack.c.h.b16 %v110
    %v475 = vunpack.c.l.b16 %v111
    %v476 = vunpack.c.h.b16 %v111
    %v477 = vunpack.c.l.b16 %v112
    %v478 = vunpack.c.h.b16 %v112
    %v479 = vunpack.c.l.b16 %v113
    %v480 = vunpack.c.h.b16 %v113
    %v481 = vunpack.c.l.b16 %v114
    %v482 = vunpack.c.h.b16 %v114
    %v483 = vunpack.c.l.b16 %v115
    %v484 = vunpack.c.h.b16 %v115
    %v485 = vunpack.c.l.b16 %v116
    %v486 = vunpack.c.h.b16 %v116
    %v487 = vunpack.c.l.b16 %v117
    %v488 = vunpack.c.h.b16 %v117
    %v489 = vunpack.c.l.b16 %v118
    %v490 = vunpack.c.h.b16 %v118
    %v491 = vunpack.c.l.b16 %v119
    %v492 = vunpack.c.h.b16 %v119
    %v493 = vunpack.c.l.b16 %v120
    %v494 = vunpack.c.h.b16 %v120
    %v495 = vunpack.c.l.b16 %v121
    %v496 = vunpack.c.h.b16 %v121
    %v497 = vunpack.c.l.b16 %v122
    %v498 = vunpack.c.h.b16 %v122
    %v499 = vunpack.c.l.b16 %v123
    %v500 = vunpack.c.h.b16 %v123
    %v501 = vunpack.c.l.b16 %v124
    %v502 = vunpack.c.h.b16 %v124
    %v503 = vunpack.c.l.b16 %v125
    %v504 = vunpack.c.h.b16 %v125
    %v505 = vunpack.c.l.b16 %v126
    %v506 = vunpack.c.h.b16 %v126
    %v507 = vunpack.c.l.b16 %v127
    %v508 = vunpack.c.h.b16 %v127
    %v509 = vunpack.c.l.b16 %v128
    %v510 = vunpack.c.h.b16 %v128
    %v511 = vunpack.c.l.b16 %v129
    %v512 = vunpack.c.h.b16 %v129
    %v513 = vunpack.c.l.b16 %v130
    %v514 = vunpack.c.h.b16 %v130
    %v515 = vunpack.c.l.b16 %v131
    %v516 = vunpack.c.h.b16 %v131
    %v517 = vunpack.c.l.b16 %v132
    %v518 = vunpack.c.h.b16 %v132
    %v519 = vunpack.c.l.b16 %v133
    %v520 = vunpack.c.h.b16 %v133
    %v521 = vunpack.c.l.b16 %v134
    %v522 = vunpack.c.h.b16 %v134
    %v523 = vunpack.c.l.b16 %v135
    %v524 = vunpack.c.h.b16 %v135
    %v525 = vunpack.c.l.b16 %v136
    %v526 = vunpack.c.h.b16 %v136
    %v527 = vunpack.c.l.b16 %v137
    %v528 = vunpack.c.h.b16 %v137
    %v529 = vunpack.c.l.b16 %v138
    %v530 = vunpack.c.h.b16 %v138
    %v531 = vunpack.c.l.b16 %v139
    %v532 = vunpack.c.h.b16 %v139
    %v533 = vunpack.c.l.b16 %v140
    %v534 = vunpack.c.h.b16 %v140
    %v535 = vunpack.c.l.b16 %v141
    %v536 = vunpack.c.h.b16 %v141
    %v537 = vunpack.c.l.b16 %v142
    %v538 = vunpack.c.h.b16 %v142
    %v539 = vunpack.c.l.b16 %v143
    %v540 = vunpack.c.h.b16 %v143
    %v541 = vunpack.c.l.b16 %v144
    %v542 = vunpack.c.h.b16 %v144
    %v543 = vunpack.c.l.b16 %v145
    %v544 = vunpack.c.h.b16 %v145
    %v545 = vunpack.c.l.b16 %v146
    %v546 = vunpack.c.h.b16 %v146
    %v547 = vunpack.c.l.b16 %v147
    %v548 = vunpack.c.h.b16 %v147
    %v549 = vunpack.c.l.b16 %v148
    %v550 = vunpack.c.h.b16 %v148
    %v551 = vunpack.c.l.b16 %v149
    %v552 = vunpack.c.h.b16 %v149
    %v553 = vunpack.c.l.b16 %v150
    %v554 = vunpack.c.h.b16 %v150
    %v555 = vunpack.c.l.b16 %v151
    %v556 = vunpack.c.h.b16 %v151
    %v557 = vunpack.c.l.b16 %v152
    %v558 = vunpack.c.h.b16 %v152
    %v559 = vunpack.c.l.b16 %v153
    %v560 = vunpack.c.h.b16 %v153
    %v561 = vunpack.c.l.b16 %v154
    %v562 = vunpack.c.h.b16 %v154
    %v563 = vunpack.c.l.b16 %v155
    %v564 = vunpack.c.h.b16 %v155
    %v565 = vunpack.c.l.b16 %v156
    %v566 = vunpack.c.h.b16 %v156
    %v567 = vunpack.c.l.b16 %v157
    %v568 = vunpack.c.h.b16 %v157
    %v569 = vunpack.c.l.b16 %v158
    %v570 = vunpack.c.h.b16 %v158
    %v571 = vunpack.c.l.b16 %v159
    %v572 = vunpack.c.h.b16 %v159
    %v573 = vunpack.c.l.b16 %v160
    %v574 = vunpack.c.h.b16 %v160
    %v575 = vunpack.c.l.b16 %v161
    %v576 = vunpack.c.h.b16 %v161
    %v577 = vunpack.c.l.b16 %v162
    %v578 = vunpack.c.h.b16 %v162
    %v579 = vunpack.c.l.b16 %v163
    %v580 = vunpack.c.h.b16 %v163
    %v581 = vunpack.c.l.b16 %v164
    %v582 = vunpack.c.h.b16 %v164
    %v583 = vunpack.c.l.b16 %v165
    %v584 = vunpack.c.h.b16 %v165
    %v585 = vunpack.c.l.b16 %v166
    %v586 = vunpack.c.h.b16 %v166
    %v587 = vunpack.c.l.b16 %v167
    %v588 = vunpack.c.h.b16 %v167
    %v589 = vunpack.c.l.b16 %v168
    %v590 = vunpack.c.h.b16 %v168
    %v591 = vunpack.c.l.b16 %v169
    %v592 = vunpack.c.h.b16 %v169
    %v593 = vunpack.c.l.b16 %v170
    %v594 = vunpack.c.h.b16 %v170
    %v595 = vunpack.c.l.b16 %v171
    %v596 = vunpack.c.h.b16 %v171
    %v597 = vunpack.c.l.b16 %v172
    %v598 = vunpack.c.h.b16 %v172
    %v599 = vunpack.c.l.b16 %v173
    %v600 = vunpack.c.h.b16 %v173
    %v601 = vunpack.c.l.b16 %v174
    %v602 = vunpack.c.h.b16 %v174
    %v603 = vunpack.c.l.b16 %v175
    %v604 = vunpack.c.h.b16 %v175
    %v605 = vunpack.c.l.b16 %v176
    %v606 = vunpack.c.h.b16 %v176
    %v607 = vunpack.c.l.b16 %v177
    %v608 = vunpack.c.h.b16 %v177
    %v609 = vunpack.c.l.b16 %v178
    %v610 = vunpack.c.h.b16 %v178
    %v611 = vunpack.c.l.b16 %v179
    %v612 = vunpack.c.h.b16 %v179
    %v613 = vunpack.c.l.b16 %v180
    %v614 = vunpack.c.h.b16 %v180
    %v615 = vunpack.c.l.b16 %v181
    %v616 = vunpack.c.h.b16 %v181
    %v617 = vunpack.c.l.b16 %v182
    %v618 = vunpack.c.h.b16 %v182
    %v619 = vunpack.c.l.b16 %v183
    %v620 = vunpack.c.h.b16 %v183
    %v621 = vunpack.c.l.b16 %v184
    %v622 = vunpack.c.h.b16 %v184
    %v623 = vunpack.c.l.b16 %v185
    %v624 = vunpack.c.h.b16 %v185
    %v625 = vunpack.c.l.b16 %v186
    %v626 = vunpack.c.h.b16 %v186
    %v627 = vunpack.c.l.b16 %v187
    %v628 = vunpack.c.h.b16 %v187
    %v629 = vunpack.c.l.b16 %v188
    %v630 = vunpack.c.h.b16 %v188
    %v631 = vunpack.c.l.b16 %v189
    %v632 = vunpack.c.h.b16 %v189
    %v633 = vunpack.c.l.b16 %v190
    %v634 = vunpack.c.h.b16 %v190
    %v635 = vunpack.c.l.b16 %v191
    %v636 = vunpack.c.h.b16 %v191
    %v637 = vunpack.c.l.b16 %v192
    %v638 = vunpack.c.h.b16 %v192
    %v639 = vunpack.c.l.b16 %v193
    %v640 = vunpack.c.h.b16 %v193
    %v641 = vunpack.c.l.b16 %v194
    %v642 = vunpack.c.h.b16 %v194
    %v643 = vunpack.c.l.b16 %v195
    %v644 = vunpack.c.h.b16 %v195
    %v645 = vunpack.c.l.b16 %v196
    %v646 = vunpack.c.h.b16 %v196
    %v647 = vunpack.c.l.b16 %v197
    %v648 = vunpack.c.h.b16 %v197
    %v649 = vunpack.c.l.b16 %v198
    %v650 = vunpack.c.h.b16 %v198
    %v651 = vunpack.c.l.b16 %v199
    %v652 = vunpack.c.h.b16 %v199
    %v653 = vunpack.c.l.b16 %v200
    %v654 = vunpack.c.h.b16 %v200
    %v655 = vunpack.c.l.b16 %v201
    %v656 = vunpack.c.h.b16 %v201
    %v657 = vunpack.c.l.b16 %v202
    %v658 = vunpack.c.h.b16 %v202
    %v659 = vunpack.c.l.b16 %v203
    %v660 = vunpack.c.h.b16 %v203
    %v661 = vunpack.c.l.b16 %v204
    %v662 = vunpack.c.h.b16 %v204
    %v663 = vunpack.c.l.b16 %v205
    %v664 = vunpack.c.h.b16 %v205
    %v665 = vunpack.c.l.b16 %v206
    %v666 = vunpack.c.h.b16 %v206
    %v667 = vunpack.c.l.b16 %v207
    %v668 = vunpack.c.h.b16 %v207
    %v669 = vunpack.c.l.b16 %v208
    %v670 = vunpack.c.h.b16 %v208
    %v671 = vunpack.c.l.b16 %v209
    %v672 = vunpack.c.h.b16 %v209
    %v673 = vunpack.c.l.b16 %v210
    %v674 = vunpack.c.h.b16 %v210
    %v675 = vpack.c.b16 %v427, %v419
    %v676 = vpack.c.b16 %v428, %v420
    %v677 = vpack.c.b16 %v429, %v421
    %v678 = vpack.c.b16 %v430, %v422
    %v679 = vpack.c.b16 %v431, %v423
    %v680 = vpack.c.b16 %v432, %v424
    %v681 = vpack.c.b16 %v433, %v425
    %v682 = vpack.c.b16 %v434, %v426
    %v683 = vpack.c.b16 %v443, %v435
    %v684 = vpack.c.b16 %v444, %v436
    %v685 = vpack.c.b16 %v445, %v437
    %v686 = vpack.c.b16 %v446, %v438
    %v687 = vpack.c.b16 %v447, %v439
    %v688 = vpack.c.b16 %v448, %v440
    %v689 = vpack.c.b16 %v449, %v441
    %v690 = vpack.c.b16 %v450, %v442
    %v691 = vpack.c.b16 %v459, %v451
    %v692 = vpack.c.b16 %v460, %v452
    %v693 = vpack.c.b16 %v461, %v453
    %v694 = vpack.c.b16 %v462, %v454
    %v695 = vpack.c.b16 %v463, %v455
    %v696 = vpack.c.b16 %v464, %v456
    %v697 = vpack.c.b16 %v465, %v457
    %v698 = vpack.c.b16 %v466, %v458
    %v699 = vpack.c.b16 %v475, %v467
    %v700 = vpack.c.b16 %v476, %v468
    %v701 = vpack.c.b16 %v477, %v469
    %v702 = vpack.c.b16 %v478, %v470
    %v703 = vpack.c.b16 %v479, %v471
    %v704 = vpack.c.b16 %v480, %v472
    %v705 = vpack.c.b16 %v481, %v473
    %v706 = vpack.c.b16 %v482, %v474
    %v707 = vpack.c.b16 %v491, %v483
    %v708 = vpack.c.b16 %v492, %v484
    %v709 = vpack.c.b16 %v493, %v485
    %v710 = vpack.c.b16 %v494, %v486
    %v711 = vpack.c.b16 %v495, %v487
    %v712 = vpack.c.b16 %v496, %v488
    %v713 = vpack.c.b16 %v497, %v489
    %v714 = vpack.c.b16 %v498, %v490
    %v715 = vpack.c.b16 %v507, %v499
    %v716 = vpack.c.b16 %v508, %v500
    %v717 = vpack.c.b16 %v509, %v501
    %v718 = vpack.c.b16 %v510, %v502
    %v719 = vpack.c.b16 %v511, %v503
    %v720 = vpack.c.b16 %v512, %v504
    %v721 = vpack.c.b16 %v513, %v505
    %v722 = vpack.c.b16 %v514, %v506
    %v723 = vpack.c.b16 %v523, %v515
    %v724 = vpack.c.b16 %v524, %v516
    %v725 = vpack.c.b16 %v525, %v517
    %v726 = vpack.c.b16 %v526, %v518
    %v727 = vpack.c.b16 %v527, %v519
    %v728 = vpack.c.b16 %v528, %v520
    %v729 = vpack.c.b16 %v529, %v521
    %v730 = vpack.c.b16 %v530, %v522
    %v731 = vpack.c.b16 %v539, %v531
    %v732 = vpack.c.b16 %v540, %v532
    %v733 = vpack.c.b16 %v541, %v533
    %v734 = vpack.c.b16 %v542, %v534
    %v735 = vpack.c.b16 %v543, %v535
    %v736 = vpack.c.b16 %v544, %v536
    %v737 = vpack.c.b16 %v545, %v537
    %v738 = vpack.c.b16 %v546, %v538
    %v739 = vpack.c.b16 %v555, %v547
    %v740 = vpack.c.b16 %v556, %v548
    %v741 = vpack.c.b16 %v557, %v549
    %v742 = vpack.c.b16 %v558, %v550
    %v743 = vpack.c.b16 %v559, %v551
    %v744 = vpack.c.b16 %v560, %v552
    %v745 = vpack.c.b16 %v561, %v553
    %v746 = vpack.c.b16 %v562, %v554
    %v747 = vpack.c.b16 %v571, %v563
    %v748 = vpack.c.b16 %v572, %v564
    %v749 = vpack.c.b16 %v573, %v565
    %v750 = vpack.c.b16 %v574, %v566
    %v751 = vpack.c.b16 %v575, %v567
    %v752 = vpack.c.b16 %v576, %v568
    %v753 = vpack.c.b16 %v577, %v569
    %v754 = vpack.c.b16 %v578, %v570
    %v755 = vpack.c.b16 %v587, %v579
    %v756 = vpack.c.b16 %v588, %v580
    %v757 = vpack.c.b16 %v589, %v581
    %v758 = vpack.c.b16 %v590, %v582
    %v759 = vpack.c.b16 %v591, %v583
    %v760 = vpack.c.b16 %v592, %v584
    %v761 = vpack.c.b16 %v593, %v585
    %v762 = vpack.c.b16 %v594, %v586
    %v763 = vpack.c.b16 %v603, %v595
    %v764 = vpack.c.b16 %v604, %v596
    %v765 = vpack.c.b16 %v605, %v597
    %v766 = vpack.c.b16 %v606, %v598
    %v767 = vpack.c.b16 %v607, %v599
    %v768 = vpack.c.b16 %v608, %v600
    %v769 = vpack.c.b16 %v609, %v601
    %v770 = vpack.c.b16 %v610, %v602
    %v771 = vpack.c.b16 %v619, %v611
    %v772 = vpack.c.b16 %v620, %v612
    %v773 = vpack.c.b16 %v621, %v613
    %v774 = vpack.c.b16 %v622, %v614
    %v775 = vpack.c.b16 %v623, %v615
    %v776 = vpack.c.b16 %v624, %v616
    %v777 = vpack.c.b16 %v625, %v617
    %v778 = vpack.c.b16 %v626, %v618
    %v779 = vpack.c.b16 %v635, %v627
    %v780 = vpack.c.b16 %v636, %v628
    %v781 = vpack.c.b16 %v637, %v629
    %v782 = vpack.c.b16 %v638, %v630
    %v783 = vpack.c.b16 %v639, %v631
    %v784 = vpack.c.b16 %v640, %v632
    %v785 = vpack.c.b16 %v641, %v633
    %v786 = vpack.c.b16 %v642, %v634
    %v787 = vpack.c.b16 %v651, %v643
    %v788 = vpack.c.b16 %v652, %v644
    %v789 = vpack.c.b16 %v653, %v645
    %v790 = vpack.c.b16 %v654, %v646
    %v791 = vpack.c.b16 %v655, %v647
    %v792 = vpack.c.b16 %v656, %v648
    %v793 = vpack.c.b16 %v657, %v649
    %v794 = vpack.c.b16 %v658, %v650
    %v795 = vpack.c.b16 %v667, %v659
    %v796 = vpack.c.b16 %v668, %v660
    %v797 = vpack.c.b16 %v669, %v661
    %v798 = vpack.c.b16 %v670, %v662
    %v799 = vpack.c.b16 %v671, %v663
    %v800 = vpack.c.b16 %v672, %v664
    %v801 = vpack.c.b16 %v673, %v665
    %v802 = vpack.c.b16 %v674, %v666
    %931 = vmatprep.subr.bf16.mxu0 %v732
    %932 = vmatpush1.bf16.msra.mxu0 %v731
    %933 = vmatprep.subr.bf16.mxu0 %v724
    %934 = vmatpush1.bf16.msra.mxu0 %v723
    %935 = vmatprep.subr.bf16.mxu0 %v716
    %936 = vmatpush1.bf16.msra.mxu0 %v715
    %937 = vmatprep.subr.bf16.mxu0 %v708
    %938 = vmatpush1.bf16.msra.mxu0 %v707
    %939 = vmatprep.subr.bf16.mxu0 %v700
    %940 = vmatpush1.bf16.msra.mxu0 %v699
    %941 = vmatprep.subr.bf16.mxu0 %v692
    %942 = vmatpush1.bf16.msra.mxu0 %v691
    %943 = vmatprep.subr.bf16.mxu0 %v684
    %944 = vmatpush1.bf16.msra.mxu0 %v683
    %945 = vmatprep.subr.bf16.mxu0 %v676
    %946 = vmatpush1.bf16.msra.mxu0 %v675
    %947 = vmatprep.subr.bf16.mxu0 %v796
    %948 = vmatpush2.bf16.msra.mxu0 %v795
    %949 = vmatprep.subr.bf16.mxu0 %v788
    %950 = vmatpush2.bf16.msra.mxu0 %v787
    %951 = vmatprep.subr.bf16.mxu0 %v780
    %952 = vmatpush2.bf16.msra.mxu0 %v779
    %953 = vmatprep.subr.bf16.mxu0 %v772
    %954 = vmatpush2.bf16.msra.mxu0 %v771
    %955 = vmatprep.subr.bf16.mxu0 %v764
    %956 = vmatpush2.bf16.msra.mxu0 %v763
    %957 = vmatprep.subr.bf16.mxu0 %v756
    %958 = vmatpush2.bf16.msra.mxu0 %v755
    %959 = vmatprep.subr.bf16.mxu0 %v748
    %960 = vmatpush2.bf16.msra.mxu0 %v747
    %961 = vmatprep.subr.bf16.mxu0 %v740
    %962 = vmatpush2.bf16.msra.mxu0 %v739
    %963 = vmatprep.mubr.bf16.mxu0 %v260
    %964 = vmatmul.mubr.bf16.gmra.mxu0 %v259
    %v965 = vpop.f32.mrf.mxu0
    %v966 = vadd.f32 0.0, %v965
    %v967 = vpop.f32.mrf.mxu0
    %v968 = vadd.f32 0.0, %v967
    %v969 = vpop.f32.mrf.mxu0
    %v970 = vadd.f32 0.0, %v969
    %v971 = vpop.f32.mrf.mxu0
    %v972 = vadd.f32 0.0, %v971
    %973 = vmatprep.mubr.bf16.mxu0 %v262
    %974 = vmatmul.mubr.bf16.gmra.mxu0 %v261
    %v975 = vpop.f32.mrf.mxu0
    %v976 = vadd.f32 0.0, %v975
    %v977 = vpop.f32.mrf.mxu0
    %v978 = vadd.f32 0.0, %v977
    %v979 = vpop.f32.mrf.mxu0
    %v980 = vadd.f32 0.0, %v979
    %v981 = vpop.f32.mrf.mxu0
    %v982 = vadd.f32 0.0, %v981
    %983 = vmatprep.mubr.bf16.mxu0 %v264
    %984 = vmatmul.mubr.bf16.gmra.mxu0 %v263
    %v985 = vpop.f32.mrf.mxu0
    %v986 = vadd.f32 0.0, %v985
    %v987 = vpop.f32.mrf.mxu0
    %v988 = vadd.f32 0.0, %v987
    %v989 = vpop.f32.mrf.mxu0
    %v990 = vadd.f32 0.0, %v989
    %v991 = vpop.f32.mrf.mxu0
    %v992 = vadd.f32 0.0, %v991
    %993 = vmatprep.mubr.bf16.mxu0 %v266
    %994 = vmatmul.mubr.bf16.gmra.mxu0 %v265
    %v995 = vpop.f32.mrf.mxu0
    %v996 = vadd.f32 0.0, %v995
    %v997 = vpop.f32.mrf.mxu0
    %v998 = vadd.f32 0.0, %v997
    %v999 = vpop.f32.mrf.mxu0
    %v1000 = vadd.f32 0.0, %v999
    %v1001 = vpop.f32.mrf.mxu0
    %v1002 = vadd.f32 0.0, %v1001
    %1003 = vmatprep.mubr.bf16.mxu0 %v268
    %1004 = vmatmul.mubr.bf16.gmra.mxu0 %v267
    %v1005 = vpop.f32.mrf.mxu0
    %v1006 = vadd.f32 0.0, %v1005
    %v1007 = vpop.f32.mrf.mxu0
    %v1008 = vadd.f32 0.0, %v1007
    %v1009 = vpop.f32.mrf.mxu0
    %v1010 = vadd.f32 0.0, %v1009
    %v1011 = vpop.f32.mrf.mxu0
    %v1012 = vadd.f32 0.0, %v1011
    %1013 = vmatprep.mubr.bf16.mxu0 %v270
    %1014 = vmatmul.mubr.bf16.gmra.mxu0 %v269
    %v1015 = vpop.f32.mrf.mxu0
    %v1016 = vadd.f32 0.0, %v1015
    %v1017 = vpop.f32.mrf.mxu0
    %v1018 = vadd.f32 0.0, %v1017
    %v1019 = vpop.f32.mrf.mxu0
    %v1020 = vadd.f32 0.0, %v1019
    %v1021 = vpop.f32.mrf.mxu0
    %v1022 = vadd.f32 0.0, %v1021
    %1023 = vmatprep.mubr.bf16.mxu0 %v272
    %1024 = vmatmul.mubr.bf16.gmra.mxu0 %v271
    %v1025 = vpop.f32.mrf.mxu0
    %v1026 = vadd.f32 0.0, %v1025
    %v1027 = vpop.f32.mrf.mxu0
    %v1028 = vadd.f32 0.0, %v1027
    %v1029 = vpop.f32.mrf.mxu0
    %v1030 = vadd.f32 0.0, %v1029
    %v1031 = vpop.f32.mrf.mxu0
    %v1032 = vadd.f32 0.0, %v1031
    %1033 = vmatprep.mubr.bf16.mxu0 %v274
    %1034 = vmatmul.mubr.bf16.gmra.mxu0 %v273
    %v1035 = vpop.f32.mrf.mxu0
    %v1036 = vadd.f32 0.0, %v1035
    %v1037 = vpop.f32.mrf.mxu0
    %v1038 = vadd.f32 0.0, %v1037
    %v1039 = vpop.f32.mrf.mxu0
    %v1040 = vadd.f32 0.0, %v1039
    %v1041 = vpop.f32.mrf.mxu0
    %v1042 = vadd.f32 0.0, %v1041
    %1043 = vdwg.mxu0
    %1044 = vmatprep.subr.bf16.mxu0 %v734
    %1045 = vmatpush1.bf16.msra.mxu0 %v733
    %1046 = vmatprep.subr.bf16.mxu0 %v726
    %1047 = vmatpush1.bf16.msra.mxu0 %v725
    %1048 = vmatprep.subr.bf16.mxu0 %v718
    %1049 = vmatpush1.bf16.msra.mxu0 %v717
    %1050 = vmatprep.subr.bf16.mxu0 %v710
    %1051 = vmatpush1.bf16.msra.mxu0 %v709
    %1052 = vmatprep.subr.bf16.mxu0 %v702
    %1053 = vmatpush1.bf16.msra.mxu0 %v701
    %1054 = vmatprep.subr.bf16.mxu0 %v694
    %1055 = vmatpush1.bf16.msra.mxu0 %v693
    %1056 = vmatprep.subr.bf16.mxu0 %v686
    %1057 = vmatpush1.bf16.msra.mxu0 %v685
    %1058 = vmatprep.subr.bf16.mxu0 %v678
    %1059 = vmatpush1.bf16.msra.mxu0 %v677
    %1060 = vmatprep.subr.bf16.mxu0 %v798
    %1061 = vmatpush2.bf16.msra.mxu0 %v797
    %1062 = vmatprep.subr.bf16.mxu0 %v790
    %1063 = vmatpush2.bf16.msra.mxu0 %v789
    %1064 = vmatprep.subr.bf16.mxu0 %v782
    %1065 = vmatpush2.bf16.msra.mxu0 %v781
    %1066 = vmatprep.subr.bf16.mxu0 %v774
    %1067 = vmatpush2.bf16.msra.mxu0 %v773
    %1068 = vmatprep.subr.bf16.mxu0 %v766
    %1069 = vmatpush2.bf16.msra.mxu0 %v765
    %1070 = vmatprep.subr.bf16.mxu0 %v758
    %1071 = vmatpush2.bf16.msra.mxu0 %v757
    %1072 = vmatprep.subr.bf16.mxu0 %v750
    %1073 = vmatpush2.bf16.msra.mxu0 %v749
    %1074 = vmatprep.subr.bf16.mxu0 %v742
    %1075 = vmatpush2.bf16.msra.mxu0 %v741
    %1076 = vmatprep.mubr.bf16.mxu0 %v260
    %1077 = vmatmul.mubr.bf16.gmra.mxu0 %v259
    %v1078 = vpop.f32.mrf.mxu0
    %v1079 = vadd.f32 0.0, %v1078
    %v1080 = vpop.f32.mrf.mxu0
    %v1081 = vadd.f32 0.0, %v1080
    %v1082 = vpop.f32.mrf.mxu0
    %v1083 = vadd.f32 0.0, %v1082
    %v1084 = vpop.f32.mrf.mxu0
    %v1085 = vadd.f32 0.0, %v1084
    %1086 = vmatprep.mubr.bf16.mxu0 %v262
    %1087 = vmatmul.mubr.bf16.gmra.mxu0 %v261
    %v1088 = vpop.f32.mrf.mxu0
    %v1089 = vadd.f32 0.0, %v1088
    %v1090 = vpop.f32.mrf.mxu0
    %v1091 = vadd.f32 0.0, %v1090
    %v1092 = vpop.f32.mrf.mxu0
    %v1093 = vadd.f32 0.0, %v1092
    %v1094 = vpop.f32.mrf.mxu0
    %v1095 = vadd.f32 0.0, %v1094
    %1096 = vmatprep.mubr.bf16.mxu0 %v264
    %1097 = vmatmul.mubr.bf16.gmra.mxu0 %v263
    %v1098 = vpop.f32.mrf.mxu0
    %v1099 = vadd.f32 0.0, %v1098
    %v1100 = vpop.f32.mrf.mxu0
    %v1101 = vadd.f32 0.0, %v1100
    %v1102 = vpop.f32.mrf.mxu0
    %v1103 = vadd.f32 0.0, %v1102
    %v1104 = vpop.f32.mrf.mxu0
    %v1105 = vadd.f32 0.0, %v1104
    %1106 = vmatprep.mubr.bf16.mxu0 %v266
    %1107 = vmatmul.mubr.bf16.gmra.mxu0 %v265
    %v1108 = vpop.f32.mrf.mxu0
    %v1109 = vadd.f32 0.0, %v1108
    %v1110 = vpop.f32.mrf.mxu0
    %v1111 = vadd.f32 0.0, %v1110
    %v1112 = vpop.f32.mrf.mxu0
    %v1113 = vadd.f32 0.0, %v1112
    %v1114 = vpop.f32.mrf.mxu0
    %v1115 = vadd.f32 0.0, %v1114
    %1116 = vmatprep.mubr.bf16.mxu0 %v268
    %1117 = vmatmul.mubr.bf16.gmra.mxu0 %v267
    %v1118 = vpop.f32.mrf.mxu0
    %v1119 = vadd.f32 0.0, %v1118
    %v1120 = vpop.f32.mrf.mxu0
    %v1121 = vadd.f32 0.0, %v1120
    %v1122 = vpop.f32.mrf.mxu0
    %v1123 = vadd.f32 0.0, %v1122
    %v1124 = vpop.f32.mrf.mxu0
    %v1125 = vadd.f32 0.0, %v1124
    %1126 = vmatprep.mubr.bf16.mxu0 %v270
    %1127 = vmatmul.mubr.bf16.gmra.mxu0 %v269
    %v1128 = vpop.f32.mrf.mxu0
    %v1129 = vadd.f32 0.0, %v1128
    %v1130 = vpop.f32.mrf.mxu0
    %v1131 = vadd.f32 0.0, %v1130
    %v1132 = vpop.f32.mrf.mxu0
    %v1133 = vadd.f32 0.0, %v1132
    %v1134 = vpop.f32.mrf.mxu0
    %v1135 = vadd.f32 0.0, %v1134
    %1136 = vmatprep.mubr.bf16.mxu0 %v272
    %1137 = vmatmul.mubr.bf16.gmra.mxu0 %v271
    %v1138 = vpop.f32.mrf.mxu0
    %v1139 = vadd.f32 0.0, %v1138
    %v1140 = vpop.f32.mrf.mxu0
    %v1141 = vadd.f32 0.0, %v1140
    %v1142 = vpop.f32.mrf.mxu0
    %v1143 = vadd.f32 0.0, %v1142
    %v1144 = vpop.f32.mrf.mxu0
    %v1145 = vadd.f32 0.0, %v1144
    %1146 = vmatprep.mubr.bf16.mxu0 %v274
    %1147 = vmatmul.mubr.bf16.gmra.mxu0 %v273
    %v1148 = vpop.f32.mrf.mxu0
    %v1149 = vadd.f32 0.0, %v1148
    %v1150 = vpop.f32.mrf.mxu0
    %v1151 = vadd.f32 0.0, %v1150
    %v1152 = vpop.f32.mrf.mxu0
    %v1153 = vadd.f32 0.0, %v1152
    %v1154 = vpop.f32.mrf.mxu0
    %v1155 = vadd.f32 0.0, %v1154
    %1156 = vdwg.mxu0
    %1157 = vmatprep.subr.bf16.mxu0 %v736
    %1158 = vmatpush1.bf16.msra.mxu0 %v735
    %1159 = vmatprep.subr.bf16.mxu0 %v728
    %1160 = vmatpush1.bf16.msra.mxu0 %v727
    %1161 = vmatprep.subr.bf16.mxu0 %v720
    %1162 = vmatpush1.bf16.msra.mxu0 %v719
    %1163 = vmatprep.subr.bf16.mxu0 %v712
    %1164 = vmatpush1.bf16.msra.mxu0 %v711
    %1165 = vmatprep.subr.bf16.mxu0 %v704
    %1166 = vmatpush1.bf16.msra.mxu0 %v703
    %1167 = vmatprep.subr.bf16.mxu0 %v696
    %1168 = vmatpush1.bf16.msra.mxu0 %v695
    %1169 = vmatprep.subr.bf16.mxu0 %v688
    %1170 = vmatpush1.bf16.msra.mxu0 %v687
    %1171 = vmatprep.subr.bf16.mxu0 %v680
    %1172 = vmatpush1.bf16.msra.mxu0 %v679
    %1173 = vmatprep.subr.bf16.mxu0 %v800
    %1174 = vmatpush2.bf16.msra.mxu0 %v799
    %1175 = vmatprep.subr.bf16.mxu0 %v792
    %1176 = vmatpush2.bf16.msra.mxu0 %v791
    %1177 = vmatprep.subr.bf16.mxu0 %v784
    %1178 = vmatpush2.bf16.msra.mxu0 %v783
    %1179 = vmatprep.subr.bf16.mxu0 %v776
    %1180 = vmatpush2.bf16.msra.mxu0 %v775
    %1181 = vmatprep.subr.bf16.mxu0 %v768
    %1182 = vmatpush2.bf16.msra.mxu0 %v767
    %1183 = vmatprep.subr.bf16.mxu0 %v760
    %1184 = vmatpush2.bf16.msra.mxu0 %v759
    %1185 = vmatprep.subr.bf16.mxu0 %v752
    %1186 = vmatpush2.bf16.msra.mxu0 %v751
    %1187 = vmatprep.subr.bf16.mxu0 %v744
    %1188 = vmatpush2.bf16.msra.mxu0 %v743
    %1189 = vmatprep.mubr.bf16.mxu0 %v260
    %1190 = vmatmul.mubr.bf16.gmra.mxu0 %v259
    %v1191 = vpop.f32.mrf.mxu0
    %v1192 = vadd.f32 0.0, %v1191
    %v1193 = vpop.f32.mrf.mxu0
    %v1194 = vadd.f32 0.0, %v1193
    %v1195 = vpop.f32.mrf.mxu0
    %v1196 = vadd.f32 0.0, %v1195
    %v1197 = vpop.f32.mrf.mxu0
    %v1198 = vadd.f32 0.0, %v1197
    %1199 = vmatprep.mubr.bf16.mxu0 %v262
    %1200 = vmatmul.mubr.bf16.gmra.mxu0 %v261
    %v1201 = vpop.f32.mrf.mxu0
    %v1202 = vadd.f32 0.0, %v1201
    %v1203 = vpop.f32.mrf.mxu0
    %v1204 = vadd.f32 0.0, %v1203
    %v1205 = vpop.f32.mrf.mxu0
    %v1206 = vadd.f32 0.0, %v1205
    %v1207 = vpop.f32.mrf.mxu0
    %v1208 = vadd.f32 0.0, %v1207
    %1209 = vmatprep.mubr.bf16.mxu0 %v264
    %1210 = vmatmul.mubr.bf16.gmra.mxu0 %v263
    %v1211 = vpop.f32.mrf.mxu0
    %v1212 = vadd.f32 0.0, %v1211
    %v1213 = vpop.f32.mrf.mxu0
    %v1214 = vadd.f32 0.0, %v1213
    %v1215 = vpop.f32.mrf.mxu0
    %v1216 = vadd.f32 0.0, %v1215
    %v1217 = vpop.f32.mrf.mxu0
    %v1218 = vadd.f32 0.0, %v1217
    %1219 = vmatprep.mubr.bf16.mxu0 %v266
    %1220 = vmatmul.mubr.bf16.gmra.mxu0 %v265
    %v1221 = vpop.f32.mrf.mxu0
    %v1222 = vadd.f32 0.0, %v1221
    %v1223 = vpop.f32.mrf.mxu0
    %v1224 = vadd.f32 0.0, %v1223
    %v1225 = vpop.f32.mrf.mxu0
    %v1226 = vadd.f32 0.0, %v1225
    %v1227 = vpop.f32.mrf.mxu0
    %v1228 = vadd.f32 0.0, %v1227
    %1229 = vmatprep.mubr.bf16.mxu0 %v268
    %1230 = vmatmul.mubr.bf16.gmra.mxu0 %v267
    %v1231 = vpop.f32.mrf.mxu0
    %v1232 = vadd.f32 0.0, %v1231
    %v1233 = vpop.f32.mrf.mxu0
    %v1234 = vadd.f32 0.0, %v1233
    %v1235 = vpop.f32.mrf.mxu0
    %v1236 = vadd.f32 0.0, %v1235
    %v1237 = vpop.f32.mrf.mxu0
    %v1238 = vadd.f32 0.0, %v1237
    %1239 = vmatprep.mubr.bf16.mxu0 %v270
    %1240 = vmatmul.mubr.bf16.gmra.mxu0 %v269
    %v1241 = vpop.f32.mrf.mxu0
    %v1242 = vadd.f32 0.0, %v1241
    %v1243 = vpop.f32.mrf.mxu0
    %v1244 = vadd.f32 0.0, %v1243
    %v1245 = vpop.f32.mrf.mxu0
    %v1246 = vadd.f32 0.0, %v1245
    %v1247 = vpop.f32.mrf.mxu0
    %v1248 = vadd.f32 0.0, %v1247
    %1249 = vmatprep.mubr.bf16.mxu0 %v272
    %1250 = vmatmul.mubr.bf16.gmra.mxu0 %v271
    %v1251 = vpop.f32.mrf.mxu0
    %v1252 = vadd.f32 0.0, %v1251
    %v1253 = vpop.f32.mrf.mxu0
    %v1254 = vadd.f32 0.0, %v1253
    %v1255 = vpop.f32.mrf.mxu0
    %v1256 = vadd.f32 0.0, %v1255
    %v1257 = vpop.f32.mrf.mxu0
    %v1258 = vadd.f32 0.0, %v1257
    %1259 = vmatprep.mubr.bf16.mxu0 %v274
    %1260 = vmatmul.mubr.bf16.gmra.mxu0 %v273
    %v1261 = vpop.f32.mrf.mxu0
    %v1262 = vadd.f32 0.0, %v1261
    %v1263 = vpop.f32.mrf.mxu0
    %v1264 = vadd.f32 0.0, %v1263
    %v1265 = vpop.f32.mrf.mxu0
    %v1266 = vadd.f32 0.0, %v1265
    %v1267 = vpop.f32.mrf.mxu0
    %v1268 = vadd.f32 0.0, %v1267
    %1269 = vdwg.mxu0
    %1270 = vmatprep.subr.bf16.mxu0 %v738
    %1271 = vmatpush1.bf16.msra.mxu0 %v737
    %1272 = vmatprep.subr.bf16.mxu0 %v730
    %1273 = vmatpush1.bf16.msra.mxu0 %v729
    %1274 = vmatprep.subr.bf16.mxu0 %v722
    %1275 = vmatpush1.bf16.msra.mxu0 %v721
    %1276 = vmatprep.subr.bf16.mxu0 %v714
    %1277 = vmatpush1.bf16.msra.mxu0 %v713
    %1278 = vmatprep.subr.bf16.mxu0 %v706
    %1279 = vmatpush1.bf16.msra.mxu0 %v705
    %1280 = vmatprep.subr.bf16.mxu0 %v698
    %1281 = vmatpush1.bf16.msra.mxu0 %v697
    %1282 = vmatprep.subr.bf16.mxu0 %v690
    %1283 = vmatpush1.bf16.msra.mxu0 %v689
    %1284 = vmatprep.subr.bf16.mxu0 %v682
    %1285 = vmatpush1.bf16.msra.mxu0 %v681
    %1286 = vmatprep.subr.bf16.mxu0 %v802
    %1287 = vmatpush2.bf16.msra.mxu0 %v801
    %1288 = vmatprep.subr.bf16.mxu0 %v794
    %1289 = vmatpush2.bf16.msra.mxu0 %v793
    %1290 = vmatprep.subr.bf16.mxu0 %v786
    %1291 = vmatpush2.bf16.msra.mxu0 %v785
    %1292 = vmatprep.subr.bf16.mxu0 %v778
    %1293 = vmatpush2.bf16.msra.mxu0 %v777
    %1294 = vmatprep.subr.bf16.mxu0 %v770
    %1295 = vmatpush2.bf16.msra.mxu0 %v769
    %1296 = vmatprep.subr.bf16.mxu0 %v762
    %1297 = vmatpush2.bf16.msra.mxu0 %v761
    %1298 = vmatprep.subr.bf16.mxu0 %v754
    %1299 = vmatpush2.bf16.msra.mxu0 %v753
    %1300 = vmatprep.subr.bf16.mxu0 %v746
    %1301 = vmatpush2.bf16.msra.mxu0 %v745
    %1302 = vmatprep.mubr.bf16.mxu0 %v260
    %1303 = vmatmul.mubr.bf16.gmra.mxu0 %v259
    %v1304 = vpop.f32.mrf.mxu0
    %v1305 = vadd.f32 0.0, %v1304
    %v1306 = vpop.f32.mrf.mxu0
    %v1307 = vadd.f32 0.0, %v1306
    %v1308 = vpop.f32.mrf.mxu0
    %v1309 = vadd.f32 0.0, %v1308
    %v1310 = vpop.f32.mrf.mxu0
    %v1311 = vadd.f32 0.0, %v1310
    %1312 = vmatprep.mubr.bf16.mxu0 %v262
    %1313 = vmatmul.mubr.bf16.gmra.mxu0 %v261
    %v1314 = vpop.f32.mrf.mxu0
    %v1315 = vadd.f32 0.0, %v1314
    %v1316 = vpop.f32.mrf.mxu0
    %v1317 = vadd.f32 0.0, %v1316
    %v1318 = vpop.f32.mrf.mxu0
    %v1319 = vadd.f32 0.0, %v1318
    %v1320 = vpop.f32.mrf.mxu0
    %v1321 = vadd.f32 0.0, %v1320
    %1322 = vmatprep.mubr.bf16.mxu0 %v264
    %1323 = vmatmul.mubr.bf16.gmra.mxu0 %v263
    %v1324 = vpop.f32.mrf.mxu0
    %v1325 = vadd.f32 0.0, %v1324
    %v1326 = vpop.f32.mrf.mxu0
    %v1327 = vadd.f32 0.0, %v1326
    %v1328 = vpop.f32.mrf.mxu0
    %v1329 = vadd.f32 0.0, %v1328
    %v1330 = vpop.f32.mrf.mxu0
    %v1331 = vadd.f32 0.0, %v1330
    %1332 = vmatprep.mubr.bf16.mxu0 %v266
    %1333 = vmatmul.mubr.bf16.gmra.mxu0 %v265
    %v1334 = vpop.f32.mrf.mxu0
    %v1335 = vadd.f32 0.0, %v1334
    %v1336 = vpop.f32.mrf.mxu0
    %v1337 = vadd.f32 0.0, %v1336
    %v1338 = vpop.f32.mrf.mxu0
    %v1339 = vadd.f32 0.0, %v1338
    %v1340 = vpop.f32.mrf.mxu0
    %v1341 = vadd.f32 0.0, %v1340
    %1342 = vmatprep.mubr.bf16.mxu0 %v268
    %1343 = vmatmul.mubr.bf16.gmra.mxu0 %v267
    %v1344 = vpop.f32.mrf.mxu0
    %v1345 = vadd.f32 0.0, %v1344
    %v1346 = vpop.f32.mrf.mxu0
    %v1347 = vadd.f32 0.0, %v1346
    %v1348 = vpop.f32.mrf.mxu0
    %v1349 = vadd.f32 0.0, %v1348
    %v1350 = vpop.f32.mrf.mxu0
    %v1351 = vadd.f32 0.0, %v1350
    %1352 = vmatprep.mubr.bf16.mxu0 %v270
    %1353 = vmatmul.mubr.bf16.gmra.mxu0 %v269
    %v1354 = vpop.f32.mrf.mxu0
    %v1355 = vadd.f32 0.0, %v1354
    %v1356 = vpop.f32.mrf.mxu0
    %v1357 = vadd.f32 0.0, %v1356
    %v1358 = vpop.f32.mrf.mxu0
    %v1359 = vadd.f32 0.0, %v1358
    %v1360 = vpop.f32.mrf.mxu0
    %v1361 = vadd.f32 0.0, %v1360
    %1362 = vmatprep.mubr.bf16.mxu0 %v272
    %1363 = vmatmul.mubr.bf16.gmra.mxu0 %v271
    %v1364 = vpop.f32.mrf.mxu0
    %v1365 = vadd.f32 0.0, %v1364
    %v1366 = vpop.f32.mrf.mxu0
    %v1367 = vadd.f32 0.0, %v1366
    %v1368 = vpop.f32.mrf.mxu0
    %v1369 = vadd.f32 0.0, %v1368
    %v1370 = vpop.f32.mrf.mxu0
    %v1371 = vadd.f32 0.0, %v1370
    %1372 = vmatprep.mubr.bf16.mxu0 %v274
    %1373 = vmatmul.mubr.bf16.gmra.mxu0 %v273
    %v1374 = vpop.f32.mrf.mxu0
    %v1375 = vadd.f32 0.0, %v1374
    %v1376 = vpop.f32.mrf.mxu0
    %v1377 = vadd.f32 0.0, %v1376
    %v1378 = vpop.f32.mrf.mxu0
    %v1379 = vadd.f32 0.0, %v1378
    %v1380 = vpop.f32.mrf.mxu0
    %v1381 = vadd.f32 0.0, %v1380
    %1382 = vdwg.mxu0
    %v1383 = vmax.f32 %v966, %v1079
    %v1384 = vmax.f32 %v968, %v1081
    %v1385 = vmax.f32 %v970, %v1083
    %v1386 = vmax.f32 %v972, %v1085
    %v1387 = vmax.f32 %v976, %v1089
    %v1388 = vmax.f32 %v978, %v1091
    %v1389 = vmax.f32 %v980, %v1093
    %v1390 = vmax.f32 %v982, %v1095
    %v1391 = vmax.f32 %v986, %v1099
    %v1392 = vmax.f32 %v988, %v1101
    %v1393 = vmax.f32 %v990, %v1103
    %v1394 = vmax.f32 %v992, %v1105
    %v1395 = vmax.f32 %v996, %v1109
    %v1396 = vmax.f32 %v998, %v1111
    %v1397 = vmax.f32 %v1000, %v1113
    %v1398 = vmax.f32 %v1002, %v1115
    %v1399 = vmax.f32 %v1006, %v1119
    %v1400 = vmax.f32 %v1008, %v1121
    %v1401 = vmax.f32 %v1010, %v1123
    %v1402 = vmax.f32 %v1012, %v1125
    %v1403 = vmax.f32 %v1016, %v1129
    %v1404 = vmax.f32 %v1018, %v1131
    %v1405 = vmax.f32 %v1020, %v1133
    %v1406 = vmax.f32 %v1022, %v1135
    %v1407 = vmax.f32 %v1026, %v1139
    %v1408 = vmax.f32 %v1028, %v1141
    %v1409 = vmax.f32 %v1030, %v1143
    %v1410 = vmax.f32 %v1032, %v1145
    %v1411 = vmax.f32 %v1036, %v1149
    %v1412 = vmax.f32 %v1038, %v1151
    %v1413 = vmax.f32 %v1040, %v1153
    %v1414 = vmax.f32 %v1042, %v1155
    %v1415 = vmax.f32 %v1192, %v1305
    %v1416 = vmax.f32 %v1194, %v1307
    %v1417 = vmax.f32 %v1196, %v1309
    %v1418 = vmax.f32 %v1198, %v1311
    %v1419 = vmax.f32 %v1202, %v1315
    %v1420 = vmax.f32 %v1204, %v1317
    %v1421 = vmax.f32 %v1206, %v1319
    %v1422 = vmax.f32 %v1208, %v1321
    %v1423 = vmax.f32 %v1212, %v1325
    %v1424 = vmax.f32 %v1214, %v1327
    %v1425 = vmax.f32 %v1216, %v1329
    %v1426 = vmax.f32 %v1218, %v1331
    %v1427 = vmax.f32 %v1222, %v1335
    %v1428 = vmax.f32 %v1224, %v1337
    %v1429 = vmax.f32 %v1226, %v1339
    %v1430 = vmax.f32 %v1228, %v1341
    %v1431 = vmax.f32 %v1232, %v1345
    %v1432 = vmax.f32 %v1234, %v1347
    %v1433 = vmax.f32 %v1236, %v1349
    %v1434 = vmax.f32 %v1238, %v1351
    %v1435 = vmax.f32 %v1242, %v1355
    %v1436 = vmax.f32 %v1244, %v1357
    %v1437 = vmax.f32 %v1246, %v1359
    %v1438 = vmax.f32 %v1248, %v1361
    %v1439 = vmax.f32 %v1252, %v1365
    %v1440 = vmax.f32 %v1254, %v1367
    %v1441 = vmax.f32 %v1256, %v1369
    %v1442 = vmax.f32 %v1258, %v1371
    %v1443 = vmax.f32 %v1262, %v1375
    %v1444 = vmax.f32 %v1264, %v1377
    %v1445 = vmax.f32 %v1266, %v1379
    %v1446 = vmax.f32 %v1268, %v1381
    %v1447 = vmax.f32 %v1383, %v1415
    %v1448 = vmax.f32 %v1384, %v1416
    %v1449 = vmax.f32 %v1385, %v1417
    %v1450 = vmax.f32 %v1386, %v1418
    %v1451 = vmax.f32 %v1387, %v1419
    %v1452 = vmax.f32 %v1388, %v1420
    %v1453 = vmax.f32 %v1389, %v1421
    %v1454 = vmax.f32 %v1390, %v1422
    %v1455 = vmax.f32 %v1391, %v1423
    %v1456 = vmax.f32 %v1392, %v1424
    %v1457 = vmax.f32 %v1393, %v1425
    %v1458 = vmax.f32 %v1394, %v1426
    %v1459 = vmax.f32 %v1395, %v1427
    %v1460 = vmax.f32 %v1396, %v1428
    %v1461 = vmax.f32 %v1397, %v1429
    %v1462 = vmax.f32 %v1398, %v1430
    %v1463 = vmax.f32 %v1399, %v1431
    %v1464 = vmax.f32 %v1400, %v1432
    %v1465 = vmax.f32 %v1401, %v1433
    %v1466 = vmax.f32 %v1402, %v1434
    %v1467 = vmax.f32 %v1403, %v1435
    %v1468 = vmax.f32 %v1404, %v1436
    %v1469 = vmax.f32 %v1405, %v1437
    %v1470 = vmax.f32 %v1406, %v1438
    %v1471 = vmax.f32 %v1407, %v1439
    %v1472 = vmax.f32 %v1408, %v1440
    %v1473 = vmax.f32 %v1409, %v1441
    %v1474 = vmax.f32 %v1410, %v1442
    %v1475 = vmax.f32 %v1411, %v1443
    %v1476 = vmax.f32 %v1412, %v1444
    %v1477 = vmax.f32 %v1413, %v1445
    %v1478 = vmax.f32 %v1414, %v1446
    %v1479 = vld [vmem:[%s2] sm:$0x3]
    %v1481 = vlaneseq
    %v1482 = vshrl.u32 %v1481, 7
    %v1483 = vsub.s32 0, %v1482
    %v1484 = vrot.slane %v1479, %v1483
    %v1485 = vlaneseq
    %v1486 = vshrl.u32 %v1485, 7
    %v1487 = vsub.s32 1, %v1486
    %v1488 = vrot.slane %v1479, %v1487
    %v1491 = vadd.f32 %v1447, %v1484
    %v1492 = vadd.f32 %v1448, %v1488
    %v1493 = vadd.f32 %v1449, %v1484
    %v1494 = vadd.f32 %v1450, %v1488
    %v1495 = vadd.f32 %v1451, %v1484
    %v1496 = vadd.f32 %v1452, %v1488
    %v1497 = vadd.f32 %v1453, %v1484
    %v1498 = vadd.f32 %v1454, %v1488
    %v1499 = vadd.f32 %v1455, %v1484
    %v1500 = vadd.f32 %v1456, %v1488
    %v1501 = vadd.f32 %v1457, %v1484
    %v1502 = vadd.f32 %v1458, %v1488
    %v1503 = vadd.f32 %v1459, %v1484
    %v1504 = vadd.f32 %v1460, %v1488
    %v1505 = vadd.f32 %v1461, %v1484
    %v1506 = vadd.f32 %v1462, %v1488
    %v1507 = vadd.f32 %v1463, %v1484
    %v1508 = vadd.f32 %v1464, %v1488
    %v1509 = vadd.f32 %v1465, %v1484
    %v1510 = vadd.f32 %v1466, %v1488
    %v1511 = vadd.f32 %v1467, %v1484
    %v1512 = vadd.f32 %v1468, %v1488
    %v1513 = vadd.f32 %v1469, %v1484
    %v1514 = vadd.f32 %v1470, %v1488
    %v1515 = vadd.f32 %v1471, %v1484
    %v1516 = vadd.f32 %v1472, %v1488
    %v1517 = vadd.f32 %v1473, %v1484
    %v1518 = vadd.f32 %v1474, %v1488
    %v1519 = vadd.f32 %v1475, %v1484
    %v1520 = vadd.f32 %v1476, %v1488
    %v1521 = vadd.f32 %v1477, %v1484
    %v1522 = vadd.f32 %v1478, %v1488
    %v1523 = vmax.f32 %v1491, 0.0
    %v1524 = vmax.f32 %v1492, 0.0
    %v1525 = vmax.f32 %v1493, 0.0
    %v1526 = vmax.f32 %v1494, 0.0
    %v1527 = vmax.f32 %v1495, 0.0
    %v1528 = vmax.f32 %v1496, 0.0
    %v1529 = vmax.f32 %v1497, 0.0
    %v1530 = vmax.f32 %v1498, 0.0
    %v1531 = vmax.f32 %v1499, 0.0
    %v1532 = vmax.f32 %v1500, 0.0
    %v1533 = vmax.f32 %v1501, 0.0
    %v1534 = vmax.f32 %v1502, 0.0
    %v1535 = vmax.f32 %v1503, 0.0
    %v1536 = vmax.f32 %v1504, 0.0
    %v1537 = vmax.f32 %v1505, 0.0
    %v1538 = vmax.f32 %v1506, 0.0
    %v1539 = vmax.f32 %v1507, 0.0
    %v1540 = vmax.f32 %v1508, 0.0
    %v1541 = vmax.f32 %v1509, 0.0
    %v1542 = vmax.f32 %v1510, 0.0
    %v1543 = vmax.f32 %v1511, 0.0
    %v1544 = vmax.f32 %v1512, 0.0
    %v1545 = vmax.f32 %v1513, 0.0
    %v1546 = vmax.f32 %v1514, 0.0
    %v1547 = vmax.f32 %v1515, 0.0
    %v1548 = vmax.f32 %v1516, 0.0
    %v1549 = vmax.f32 %v1517, 0.0
    %v1550 = vmax.f32 %v1518, 0.0
    %v1551 = vmax.f32 %v1519, 0.0
    %v1552 = vmax.f32 %v1520, 0.0
    %v1553 = vmax.f32 %v1521, 0.0
    %v1554 = vmax.f32 %v1522, 0.0
    %v1555 = vpack.c.bf16 %v1525, %v1523
    %v1556 = vpack.c.bf16 %v1526, %v1524
    %v1557 = vpack.c.bf16 %v1529, %v1527
    %v1558 = vpack.c.bf16 %v1530, %v1528
    %v1559 = vpack.c.bf16 %v1533, %v1531
    %v1560 = vpack.c.bf16 %v1534, %v1532
    %v1561 = vpack.c.bf16 %v1537, %v1535
    %v1562 = vpack.c.bf16 %v1538, %v1536
    %v1563 = vpack.c.bf16 %v1541, %v1539
    %v1564 = vpack.c.bf16 %v1542, %v1540
    %v1565 = vpack.c.bf16 %v1545, %v1543
    %v1566 = vpack.c.bf16 %v1546, %v1544
    %v1567 = vpack.c.bf16 %v1549, %v1547
    %v1568 = vpack.c.bf16 %v1550, %v1548
    %v1569 = vpack.c.bf16 %v1553, %v1551
    %v1570 = vpack.c.bf16 %v1554, %v1552
    %v1571 = vld [vmem:[#allocation4] sm:$0xff]
    %v1572 = vld [vmem:[#allocation4 + $0x8] sm:$0xff]
    %v1573 = vld [vmem:[#allocation4 + $0x10] sm:$0xff]
    %v1574 = vld [vmem:[#allocation4 + $0x18] sm:$0xff]
    %v1575 = vld [vmem:[#allocation4 + $0x20] sm:$0xff]
    %v1576 = vld [vmem:[#allocation4 + $0x28] sm:$0xff]
    %v1577 = vld [vmem:[#allocation4 + $0x30] sm:$0xff]
    %v1578 = vld [vmem:[#allocation4 + $0x38] sm:$0xff]
    %v1579 = vld [vmem:[#allocation4 + $0x40] sm:$0xff]
    %v1580 = vld [vmem:[#allocation4 + $0x48] sm:$0xff]
    %v1581 = vld [vmem:[#allocation4 + $0x50] sm:$0xff]
    %v1582 = vld [vmem:[#allocation4 + $0x58] sm:$0xff]
    %v1583 = vld [vmem:[#allocation4 + $0x60] sm:$0xff]
    %v1584 = vld [vmem:[#allocation4 + $0x68] sm:$0xff]
    %v1585 = vld [vmem:[#allocation4 + $0x70] sm:$0xff]
    %v1586 = vld [vmem:[#allocation4 + $0x78] sm:$0xff]
    %v1587 = vld [vmem:[#allocation4 + $0x80] sm:$0xff]
    %v1588 = vld [vmem:[#allocation4 + $0x88] sm:$0xff]
    %v1589 = vld [vmem:[#allocation4 + $0x90] sm:$0xff]
    %v1590 = vld [vmem:[#allocation4 + $0x98] sm:$0xff]
    %v1591 = vld [vmem:[#allocation4 + $0xa0] sm:$0xff]
    %v1592 = vld [vmem:[#allocation4 + $0xa8] sm:$0xff]
    %v1593 = vld [vmem:[#allocation4 + $0xb0] sm:$0xff]
    %v1594 = vld [vmem:[#allocation4 + $0xb8] sm:$0xff]
    %v1595 = vld [vmem:[#allocation4 + $0xc0] sm:$0xff]
    %v1596 = vld [vmem:[#allocation4 + $0xc8] sm:$0xff]
    %v1597 = vld [vmem:[#allocation4 + $0xd0] sm:$0xff]
    %v1598 = vld [vmem:[#allocation4 + $0xd8] sm:$0xff]
    %v1599 = vld [vmem:[#allocation4 + $0xe0] sm:$0xff]
    %v1600 = vld [vmem:[#allocation4 + $0xe8] sm:$0xff]
    %v1601 = vld [vmem:[#allocation4 + $0xf0] sm:$0xff]
    %v1602 = vld [vmem:[#allocation4 + $0xf8] sm:$0xff]
    %v1603 = vld [vmem:[#allocation4 + $0x100] sm:$0xff]
    %v1604 = vld [vmem:[#allocation4 + $0x108] sm:$0xff]
    %v1605 = vld [vmem:[#allocation4 + $0x110] sm:$0xff]
    %v1606 = vld [vmem:[#allocation4 + $0x118] sm:$0xff]
    %v1607 = vld [vmem:[#allocation4 + $0x120] sm:$0xff]
    %v1608 = vld [vmem:[#allocation4 + $0x128] sm:$0xff]
    %v1609 = vld [vmem:[#allocation4 + $0x130] sm:$0xff]
    %v1610 = vld [vmem:[#allocation4 + $0x138] sm:$0xff]
    %v1611 = vld [vmem:[#allocation4 + $0x140] sm:$0xff]
    %v1612 = vld [vmem:[#allocation4 + $0x148] sm:$0xff]
    %v1613 = vld [vmem:[#allocation4 + $0x150] sm:$0xff]
    %v1614 = vld [vmem:[#allocation4 + $0x158] sm:$0xff]
    %v1615 = vld [vmem:[#allocation4 + $0x160] sm:$0xff]
    %v1616 = vld [vmem:[#allocation4 + $0x168] sm:$0xff]
    %v1617 = vld [vmem:[#allocation4 + $0x170] sm:$0xff]
    %v1618 = vld [vmem:[#allocation4 + $0x178] sm:$0xff]
    %v1619 = vld [vmem:[#allocation4 + $0x180] sm:$0xff]
    %v1620 = vld [vmem:[#allocation4 + $0x188] sm:$0xff]
    %v1621 = vld [vmem:[#allocation4 + $0x190] sm:$0xff]
    %v1622 = vld [vmem:[#allocation4 + $0x198] sm:$0xff]
    %v1623 = vld [vmem:[#allocation4 + $0x1a0] sm:$0xff]
    %v1624 = vld [vmem:[#allocation4 + $0x1a8] sm:$0xff]
    %v1625 = vld [vmem:[#allocation4 + $0x1b0] sm:$0xff]
    %v1626 = vld [vmem:[#allocation4 + $0x1b8] sm:$0xff]
    %v1627 = vld [vmem:[#allocation4 + $0x1c0] sm:$0xff]
    %v1628 = vld [vmem:[#allocation4 + $0x1c8] sm:$0xff]
    %v1629 = vld [vmem:[#allocation4 + $0x1d0] sm:$0xff]
    %v1630 = vld [vmem:[#allocation4 + $0x1d8] sm:$0xff]
    %v1631 = vld [vmem:[#allocation4 + $0x1e0] sm:$0xff]
    %v1632 = vld [vmem:[#allocation4 + $0x1e8] sm:$0xff]
    %v1633 = vld [vmem:[#allocation4 + $0x1f0] sm:$0xff]
    %v1634 = vld [vmem:[#allocation4 + $0x1f8] sm:$0xff]
    %v1699 = vunpack.c.l.b16 %v1571
    %v1700 = vunpack.c.h.b16 %v1571
    %v1701 = vunpack.c.l.b16 %v1572
    %v1702 = vunpack.c.h.b16 %v1572
    %v1703 = vunpack.c.l.b16 %v1573
    %v1704 = vunpack.c.h.b16 %v1573
    %v1705 = vunpack.c.l.b16 %v1574
    %v1706 = vunpack.c.h.b16 %v1574
    %v1707 = vunpack.c.l.b16 %v1575
    %v1708 = vunpack.c.h.b16 %v1575
    %v1709 = vunpack.c.l.b16 %v1576
    %v1710 = vunpack.c.h.b16 %v1576
    %v1711 = vunpack.c.l.b16 %v1577
    %v1712 = vunpack.c.h.b16 %v1577
    %v1713 = vunpack.c.l.b16 %v1578
    %v1714 = vunpack.c.h.b16 %v1578
    %v1715 = vunpack.c.l.b16 %v1579
    %v1716 = vunpack.c.h.b16 %v1579
    %v1717 = vunpack.c.l.b16 %v1580
    %v1718 = vunpack.c.h.b16 %v1580
    %v1719 = vunpack.c.l.b16 %v1581
    %v1720 = vunpack.c.h.b16 %v1581
    %v1721 = vunpack.c.l.b16 %v1582
    %v1722 = vunpack.c.h.b16 %v1582
    %v1723 = vunpack.c.l.b16 %v1583
    %v1724 = vunpack.c.h.b16 %v1583
    %v1725 = vunpack.c.l.b16 %v1584
    %v1726 = vunpack.c.h.b16 %v1584
    %v1727 = vunpack.c.l.b16 %v1585
    %v1728 = vunpack.c.h.b16 %v1585
    %v1729 = vunpack.c.l.b16 %v1586
    %v1730 = vunpack.c.h.b16 %v1586
    %v1731 = vunpack.c.l.b16 %v1587
    %v1732 = vunpack.c.h.b16 %v1587
    %v1733 = vunpack.c.l.b16 %v1588
    %v1734 = vunpack.c.h.b16 %v1588
    %v1735 = vunpack.c.l.b16 %v1589
    %v1736 = vunpack.c.h.b16 %v1589
    %v1737 = vunpack.c.l.b16 %v1590
    %v1738 = vunpack.c.h.b16 %v1590
    %v1739 = vunpack.c.l.b16 %v1591
    %v1740 = vunpack.c.h.b16 %v1591
    %v1741 = vunpack.c.l.b16 %v1592
    %v1742 = vunpack.c.h.b16 %v1592
    %v1743 = vunpack.c.l.b16 %v1593
    %v1744 = vunpack.c.h.b16 %v1593
    %v1745 = vunpack.c.l.b16 %v1594
    %v1746 = vunpack.c.h.b16 %v1594
    %v1747 = vunpack.c.l.b16 %v1595
    %v1748 = vunpack.c.h.b16 %v1595
    %v1749 = vunpack.c.l.b16 %v1596
    %v1750 = vunpack.c.h.b16 %v1596
    %v1751 = vunpack.c.l.b16 %v1597
    %v1752 = vunpack.c.h.b16 %v1597
    %v1753 = vunpack.c.l.b16 %v1598
    %v1754 = vunpack.c.h.b16 %v1598
    %v1755 = vunpack.c.l.b16 %v1599
    %v1756 = vunpack.c.h.b16 %v1599
    %v1757 = vunpack.c.l.b16 %v1600
    %v1758 = vunpack.c.h.b16 %v1600
    %v1759 = vunpack.c.l.b16 %v1601
    %v1760 = vunpack.c.h.b16 %v1601
    %v1761 = vunpack.c.l.b16 %v1602
    %v1762 = vunpack.c.h.b16 %v1602
    %v1763 = vunpack.c.l.b16 %v1603
    %v1764 = vunpack.c.h.b16 %v1603
    %v1765 = vunpack.c.l.b16 %v1604
    %v1766 = vunpack.c.h.b16 %v1604
    %v1767 = vunpack.c.l.b16 %v1605
    %v1768 = vunpack.c.h.b16 %v1605
    %v1769 = vunpack.c.l.b16 %v1606
    %v1770 = vunpack.c.h.b16 %v1606
    %v1771 = vunpack.c.l.b16 %v1607
    %v1772 = vunpack.c.h.b16 %v1607
    %v1773 = vunpack.c.l.b16 %v1608
    %v1774 = vunpack.c.h.b16 %v1608
    %v1775 = vunpack.c.l.b16 %v1609
    %v1776 = vunpack.c.h.b16 %v1609
    %v1777 = vunpack.c.l.b16 %v1610
    %v1778 = vunpack.c.h.b16 %v1610
    %v1779 = vunpack.c.l.b16 %v1611
    %v1780 = vunpack.c.h.b16 %v1611
    %v1781 = vunpack.c.l.b16 %v1612
    %v1782 = vunpack.c.h.b16 %v1612
    %v1783 = vunpack.c.l.b16 %v1613
    %v1784 = vunpack.c.h.b16 %v1613
    %v1785 = vunpack.c.l.b16 %v1614
    %v1786 = vunpack.c.h.b16 %v1614
    %v1787 = vunpack.c.l.b16 %v1615
    %v1788 = vunpack.c.h.b16 %v1615
    %v1789 = vunpack.c.l.b16 %v1616
    %v1790 = vunpack.c.h.b16 %v1616
    %v1791 = vunpack.c.l.b16 %v1617
    %v1792 = vunpack.c.h.b16 %v1617
    %v1793 = vunpack.c.l.b16 %v1618
    %v1794 = vunpack.c.h.b16 %v1618
    %v1795 = vunpack.c.l.b16 %v1619
    %v1796 = vunpack.c.h.b16 %v1619
    %v1797 = vunpack.c.l.b16 %v1620
    %v1798 = vunpack.c.h.b16 %v1620
    %v1799 = vunpack.c.l.b16 %v1621
    %v1800 = vunpack.c.h.b16 %v1621
    %v1801 = vunpack.c.l.b16 %v1622
    %v1802 = vunpack.c.h.b16 %v1622
    %v1803 = vunpack.c.l.b16 %v1623
    %v1804 = vunpack.c.h.b16 %v1623
    %v1805 = vunpack.c.l.b16 %v1624
    %v1806 = vunpack.c.h.b16 %v1624
    %v1807 = vunpack.c.l.b16 %v1625
    %v1808 = vunpack.c.h.b16 %v1625
    %v1809 = vunpack.c.l.b16 %v1626
    %v1810 = vunpack.c.h.b16 %v1626
    %v1811 = vunpack.c.l.b16 %v1627
    %v1812 = vunpack.c.h.b16 %v1627
    %v1813 = vunpack.c.l.b16 %v1628
    %v1814 = vunpack.c.h.b16 %v1628
    %v1815 = vunpack.c.l.b16 %v1629
    %v1816 = vunpack.c.h.b16 %v1629
    %v1817 = vunpack.c.l.b16 %v1630
    %v1818 = vunpack.c.h.b16 %v1630
    %v1819 = vunpack.c.l.b16 %v1631
    %v1820 = vunpack.c.h.b16 %v1631
    %v1821 = vunpack.c.l.b16 %v1632
    %v1822 = vunpack.c.h.b16 %v1632
    %v1823 = vunpack.c.l.b16 %v1633
    %v1824 = vunpack.c.h.b16 %v1633
    %v1825 = vunpack.c.l.b16 %v1634
    %v1826 = vunpack.c.h.b16 %v1634
    %v1827 = vpack.c.b16 %v1703, %v1699
    %v1828 = vpack.c.b16 %v1704, %v1700
    %v1829 = vpack.c.b16 %v1705, %v1701
    %v1830 = vpack.c.b16 %v1706, %v1702
    %v1831 = vpack.c.b16 %v1711, %v1707
    %v1832 = vpack.c.b16 %v1712, %v1708
    %v1833 = vpack.c.b16 %v1713, %v1709
    %v1834 = vpack.c.b16 %v1714, %v1710
    %v1835 = vpack.c.b16 %v1719, %v1715
    %v1836 = vpack.c.b16 %v1720, %v1716
    %v1837 = vpack.c.b16 %v1721, %v1717
    %v1838 = vpack.c.b16 %v1722, %v1718
    %v1839 = vpack.c.b16 %v1727, %v1723
    %v1840 = vpack.c.b16 %v1728, %v1724
    %v1841 = vpack.c.b16 %v1729, %v1725
    %v1842 = vpack.c.b16 %v1730, %v1726
    %v1843 = vpack.c.b16 %v1735, %v1731
    %v1844 = vpack.c.b16 %v1736, %v1732
    %v1845 = vpack.c.b16 %v1737, %v1733
    %v1846 = vpack.c.b16 %v1738, %v1734
    %v1847 = vpack.c.b16 %v1743, %v1739
    %v1848 = vpack.c.b16 %v1744, %v1740
    %v1849 = vpack.c.b16 %v1745, %v1741
    %v1850 = vpack.c.b16 %v1746, %v1742
    %v1851 = vpack.c.b16 %v1751, %v1747
    %v1852 = vpack.c.b16 %v1752, %v1748
    %v1853 = vpack.c.b16 %v1753, %v1749
    %v1854 = vpack.c.b16 %v1754, %v1750
    %v1855 = vpack.c.b16 %v1759, %v1755
    %v1856 = vpack.c.b16 %v1760, %v1756
    %v1857 = vpack.c.b16 %v1761, %v1757
    %v1858 = vpack.c.b16 %v1762, %v1758
    %v1859 = vpack.c.b16 %v1767, %v1763
    %v1860 = vpack.c.b16 %v1768, %v1764
    %v1861 = vpack.c.b16 %v1769, %v1765
    %v1862 = vpack.c.b16 %v1770, %v1766
    %v1863 = vpack.c.b16 %v1775, %v1771
    %v1864 = vpack.c.b16 %v1776, %v1772
    %v1865 = vpack.c.b16 %v1777, %v1773
    %v1866 = vpack.c.b16 %v1778, %v1774
    %v1867 = vpack.c.b16 %v1783, %v1779
    %v1868 = vpack.c.b16 %v1784, %v1780
    %v1869 = vpack.c.b16 %v1785, %v1781
    %v1870 = vpack.c.b16 %v1786, %v1782
    %v1871 = vpack.c.b16 %v1791, %v1787
    %v1872 = vpack.c.b16 %v1792, %v1788
    %v1873 = vpack.c.b16 %v1793, %v1789
    %v1874 = vpack.c.b16 %v1794, %v1790
    %v1875 = vpack.c.b16 %v1799, %v1795
    %v1876 = vpack.c.b16 %v1800, %v1796
    %v1877 = vpack.c.b16 %v1801, %v1797
    %v1878 = vpack.c.b16 %v1802, %v1798
    %v1879 = vpack.c.b16 %v1807, %v1803
    %v1880 = vpack.c.b16 %v1808, %v1804
    %v1881 = vpack.c.b16 %v1809, %v1805
    %v1882 = vpack.c.b16 %v1810, %v1806
    %v1883 = vpack.c.b16 %v1815, %v1811
    %v1884 = vpack.c.b16 %v1816, %v1812
    %v1885 = vpack.c.b16 %v1817, %v1813
    %v1886 = vpack.c.b16 %v1818, %v1814
    %v1887 = vpack.c.b16 %v1823, %v1819
    %v1888 = vpack.c.b16 %v1824, %v1820
    %v1889 = vpack.c.b16 %v1825, %v1821
    %v1890 = vpack.c.b16 %v1826, %v1822
    %1955 = vmatprep.subr.bf16.mxu0 %v1856
    %1956 = vmatpush1.bf16.msra.mxu0 %v1855
    %1957 = vmatprep.subr.bf16.mxu0 %v1852
    %1958 = vmatpush1.bf16.msra.mxu0 %v1851
    %1959 = vmatprep.subr.bf16.mxu0 %v1848
    %1960 = vmatpush1.bf16.msra.mxu0 %v1847
    %1961 = vmatprep.subr.bf16.mxu0 %v1844
    %1962 = vmatpush1.bf16.msra.mxu0 %v1843
    %1963 = vmatprep.subr.bf16.mxu0 %v1840
    %1964 = vmatpush1.bf16.msra.mxu0 %v1839
    %1965 = vmatprep.subr.bf16.mxu0 %v1836
    %1966 = vmatpush1.bf16.msra.mxu0 %v1835
    %1967 = vmatprep.subr.bf16.mxu0 %v1832
    %1968 = vmatpush1.bf16.msra.mxu0 %v1831
    %1969 = vmatprep.subr.bf16.mxu0 %v1828
    %1970 = vmatpush1.bf16.msra.mxu0 %v1827
    %1971 = vmatprep.subr.bf16.mxu0 %v1888
    %1972 = vmatpush2.bf16.msra.mxu0 %v1887
    %1973 = vmatprep.subr.bf16.mxu0 %v1884
    %1974 = vmatpush2.bf16.msra.mxu0 %v1883
    %1975 = vmatprep.subr.bf16.mxu0 %v1880
    %1976 = vmatpush2.bf16.msra.mxu0 %v1879
    %1977 = vmatprep.subr.bf16.mxu0 %v1876
    %1978 = vmatpush2.bf16.msra.mxu0 %v1875
    %1979 = vmatprep.subr.bf16.mxu0 %v1872
    %1980 = vmatpush2.bf16.msra.mxu0 %v1871
    %1981 = vmatprep.subr.bf16.mxu0 %v1868
    %1982 = vmatpush2.bf16.msra.mxu0 %v1867
    %1983 = vmatprep.subr.bf16.mxu0 %v1864
    %1984 = vmatpush2.bf16.msra.mxu0 %v1863
    %1985 = vmatprep.subr.bf16.mxu0 %v1860
    %1986 = vmatpush2.bf16.msra.mxu0 %v1859
    %1987 = vmatprep.mubr.bf16.mxu0 %v1556
    %1988 = vmatmul.mubr.bf16.gmra.mxu0 %v1555
    %v1989 = vpop.f32.mrf.mxu0
    %v1990 = vadd.f32 0.0, %v1989
    %v1991 = vpop.f32.mrf.mxu0
    %v1992 = vadd.f32 0.0, %v1991
    %v1993 = vpop.f32.mrf.mxu0
    %v1994 = vadd.f32 0.0, %v1993
    %v1995 = vpop.f32.mrf.mxu0
    %v1996 = vadd.f32 0.0, %v1995
    %1997 = vmatprep.mubr.bf16.mxu0 %v1558
    %1998 = vmatmul.mubr.bf16.gmra.mxu0 %v1557
    %v1999 = vpop.f32.mrf.mxu0
    %v2000 = vadd.f32 0.0, %v1999
    %v2001 = vpop.f32.mrf.mxu0
    %v2002 = vadd.f32 0.0, %v2001
    %v2003 = vpop.f32.mrf.mxu0
    %v2004 = vadd.f32 0.0, %v2003
    %v2005 = vpop.f32.mrf.mxu0
    %v2006 = vadd.f32 0.0, %v2005
    %2007 = vmatprep.mubr.bf16.mxu0 %v1560
    %2008 = vmatmul.mubr.bf16.gmra.mxu0 %v1559
    %v2009 = vpop.f32.mrf.mxu0
    %v2010 = vadd.f32 0.0, %v2009
    %v2011 = vpop.f32.mrf.mxu0
    %v2012 = vadd.f32 0.0, %v2011
    %v2013 = vpop.f32.mrf.mxu0
    %v2014 = vadd.f32 0.0, %v2013
    %v2015 = vpop.f32.mrf.mxu0
    %v2016 = vadd.f32 0.0, %v2015
    %2017 = vmatprep.mubr.bf16.mxu0 %v1562
    %2018 = vmatmul.mubr.bf16.gmra.mxu0 %v1561
    %v2019 = vpop.f32.mrf.mxu0
    %v2020 = vadd.f32 0.0, %v2019
    %v2021 = vpop.f32.mrf.mxu0
    %v2022 = vadd.f32 0.0, %v2021
    %v2023 = vpop.f32.mrf.mxu0
    %v2024 = vadd.f32 0.0, %v2023
    %v2025 = vpop.f32.mrf.mxu0
    %v2026 = vadd.f32 0.0, %v2025
    %2027 = vmatprep.mubr.bf16.mxu0 %v1564
    %2028 = vmatmul.mubr.bf16.gmra.mxu0 %v1563
    %v2029 = vpop.f32.mrf.mxu0
    %v2030 = vadd.f32 0.0, %v2029
    %v2031 = vpop.f32.mrf.mxu0
    %v2032 = vadd.f32 0.0, %v2031
    %v2033 = vpop.f32.mrf.mxu0
    %v2034 = vadd.f32 0.0, %v2033
    %v2035 = vpop.f32.mrf.mxu0
    %v2036 = vadd.f32 0.0, %v2035
    %2037 = vmatprep.mubr.bf16.mxu0 %v1566
    %2038 = vmatmul.mubr.bf16.gmra.mxu0 %v1565
    %v2039 = vpop.f32.mrf.mxu0
    %v2040 = vadd.f32 0.0, %v2039
    %v2041 = vpop.f32.mrf.mxu0
    %v2042 = vadd.f32 0.0, %v2041
    %v2043 = vpop.f32.mrf.mxu0
    %v2044 = vadd.f32 0.0, %v2043
    %v2045 = vpop.f32.mrf.mxu0
    %v2046 = vadd.f32 0.0, %v2045
    %2047 = vmatprep.mubr.bf16.mxu0 %v1568
    %2048 = vmatmul.mubr.bf16.gmra.mxu0 %v1567
    %v2049 = vpop.f32.mrf.mxu0
    %v2050 = vadd.f32 0.0, %v2049
    %v2051 = vpop.f32.mrf.mxu0
    %v2052 = vadd.f32 0.0, %v2051
    %v2053 = vpop.f32.mrf.mxu0
    %v2054 = vadd.f32 0.0, %v2053
    %v2055 = vpop.f32.mrf.mxu0
    %v2056 = vadd.f32 0.0, %v2055
    %2057 = vmatprep.mubr.bf16.mxu0 %v1570
    %2058 = vmatmul.mubr.bf16.gmra.mxu0 %v1569
    %v2059 = vpop.f32.mrf.mxu0
    %v2060 = vadd.f32 0.0, %v2059
    %v2061 = vpop.f32.mrf.mxu0
    %v2062 = vadd.f32 0.0, %v2061
    %v2063 = vpop.f32.mrf.mxu0
    %v2064 = vadd.f32 0.0, %v2063
    %v2065 = vpop.f32.mrf.mxu0
    %v2066 = vadd.f32 0.0, %v2065
    %2067 = vdwg.mxu0
    %2068 = vmatprep.subr.bf16.mxu0 %v1858
    %2069 = vmatpush1.bf16.msra.mxu0 %v1857
    %2070 = vmatprep.subr.bf16.mxu0 %v1854
    %2071 = vmatpush1.bf16.msra.mxu0 %v1853
    %2072 = vmatprep.subr.bf16.mxu0 %v1850
    %2073 = vmatpush1.bf16.msra.mxu0 %v1849
    %2074 = vmatprep.subr.bf16.mxu0 %v1846
    %2075 = vmatpush1.bf16.msra.mxu0 %v1845
    %2076 = vmatprep.subr.bf16.mxu0 %v1842
    %2077 = vmatpush1.bf16.msra.mxu0 %v1841
    %2078 = vmatprep.subr.bf16.mxu0 %v1838
    %2079 = vmatpush1.bf16.msra.mxu0 %v1837
    %2080 = vmatprep.subr.bf16.mxu0 %v1834
    %2081 = vmatpush1.bf16.msra.mxu0 %v1833
    %2082 = vmatprep.subr.bf16.mxu0 %v1830
    %2083 = vmatpush1.bf16.msra.mxu0 %v1829
    %2084 = vmatprep.subr.bf16.mxu0 %v1890
    %2085 = vmatpush2.bf16.msra.mxu0 %v1889
    %2086 = vmatprep.subr.bf16.mxu0 %v1886
    %2087 = vmatpush2.bf16.msra.mxu0 %v1885
    %2088 = vmatprep.subr.bf16.mxu0 %v1882
    %2089 = vmatpush2.bf16.msra.mxu0 %v1881
    %2090 = vmatprep.subr.bf16.mxu0 %v1878
    %2091 = vmatpush2.bf16.msra.mxu0 %v1877
    %2092 = vmatprep.subr.bf16.mxu0 %v1874
    %2093 = vmatpush2.bf16.msra.mxu0 %v1873
    %2094 = vmatprep.subr.bf16.mxu0 %v1870
    %2095 = vmatpush2.bf16.msra.mxu0 %v1869
    %2096 = vmatprep.subr.bf16.mxu0 %v1866
    %2097 = vmatpush2.bf16.msra.mxu0 %v1865
    %2098 = vmatprep.subr.bf16.mxu0 %v1862
    %2099 = vmatpush2.bf16.msra.mxu0 %v1861
    %2100 = vmatprep.mubr.bf16.mxu0 %v1556
    %2101 = vmatmul.mubr.bf16.gmra.mxu0 %v1555
    %v2102 = vpop.f32.mrf.mxu0
    %v2103 = vadd.f32 0.0, %v2102
    %v2104 = vpop.f32.mrf.mxu0
    %v2105 = vadd.f32 0.0, %v2104
    %v2106 = vpop.f32.mrf.mxu0
    %v2107 = vadd.f32 0.0, %v2106
    %v2108 = vpop.f32.mrf.mxu0
    %v2109 = vadd.f32 0.0, %v2108
    %2110 = vmatprep.mubr.bf16.mxu0 %v1558
    %2111 = vmatmul.mubr.bf16.gmra.mxu0 %v1557
    %v2112 = vpop.f32.mrf.mxu0
    %v2113 = vadd.f32 0.0, %v2112
    %v2114 = vpop.f32.mrf.mxu0
    %v2115 = vadd.f32 0.0, %v2114
    %v2116 = vpop.f32.mrf.mxu0
    %v2117 = vadd.f32 0.0, %v2116
    %v2118 = vpop.f32.mrf.mxu0
    %v2119 = vadd.f32 0.0, %v2118
    %2120 = vmatprep.mubr.bf16.mxu0 %v1560
    %2121 = vmatmul.mubr.bf16.gmra.mxu0 %v1559
    %v2122 = vpop.f32.mrf.mxu0
    %v2123 = vadd.f32 0.0, %v2122
    %v2124 = vpop.f32.mrf.mxu0
    %v2125 = vadd.f32 0.0, %v2124
    %v2126 = vpop.f32.mrf.mxu0
    %v2127 = vadd.f32 0.0, %v2126
    %v2128 = vpop.f32.mrf.mxu0
    %v2129 = vadd.f32 0.0, %v2128
    %2130 = vmatprep.mubr.bf16.mxu0 %v1562
    %2131 = vmatmul.mubr.bf16.gmra.mxu0 %v1561
    %v2132 = vpop.f32.mrf.mxu0
    %v2133 = vadd.f32 0.0, %v2132
    %v2134 = vpop.f32.mrf.mxu0
    %v2135 = vadd.f32 0.0, %v2134
    %v2136 = vpop.f32.mrf.mxu0
    %v2137 = vadd.f32 0.0, %v2136
    %v2138 = vpop.f32.mrf.mxu0
    %v2139 = vadd.f32 0.0, %v2138
    %2140 = vmatprep.mubr.bf16.mxu0 %v1564
    %2141 = vmatmul.mubr.bf16.gmra.mxu0 %v1563
    %v2142 = vpop.f32.mrf.mxu0
    %v2143 = vadd.f32 0.0, %v2142
    %v2144 = vpop.f32.mrf.mxu0
    %v2145 = vadd.f32 0.0, %v2144
    %v2146 = vpop.f32.mrf.mxu0
    %v2147 = vadd.f32 0.0, %v2146
    %v2148 = vpop.f32.mrf.mxu0
    %v2149 = vadd.f32 0.0, %v2148
    %2150 = vmatprep.mubr.bf16.mxu0 %v1566
    %2151 = vmatmul.mubr.bf16.gmra.mxu0 %v1565
    %v2152 = vpop.f32.mrf.mxu0
    %v2153 = vadd.f32 0.0, %v2152
    %v2154 = vpop.f32.mrf.mxu0
    %v2155 = vadd.f32 0.0, %v2154
    %v2156 = vpop.f32.mrf.mxu0
    %v2157 = vadd.f32 0.0, %v2156
    %v2158 = vpop.f32.mrf.mxu0
    %v2159 = vadd.f32 0.0, %v2158
    %2160 = vmatprep.mubr.bf16.mxu0 %v1568
    %2161 = vmatmul.mubr.bf16.gmra.mxu0 %v1567
    %v2162 = vpop.f32.mrf.mxu0
    %v2163 = vadd.f32 0.0, %v2162
    %v2164 = vpop.f32.mrf.mxu0
    %v2165 = vadd.f32 0.0, %v2164
    %v2166 = vpop.f32.mrf.mxu0
    %v2167 = vadd.f32 0.0, %v2166
    %v2168 = vpop.f32.mrf.mxu0
    %v2169 = vadd.f32 0.0, %v2168
    %2170 = vmatprep.mubr.bf16.mxu0 %v1570
    %2171 = vmatmul.mubr.bf16.gmra.mxu0 %v1569
    %v2172 = vpop.f32.mrf.mxu0
    %v2173 = vadd.f32 0.0, %v2172
    %v2174 = vpop.f32.mrf.mxu0
    %v2175 = vadd.f32 0.0, %v2174
    %v2176 = vpop.f32.mrf.mxu0
    %v2177 = vadd.f32 0.0, %v2176
    %v2178 = vpop.f32.mrf.mxu0
    %v2179 = vadd.f32 0.0, %v2178
    %2180 = vdwg.mxu0
    %v2181 = vmax.f32 %v1990, %v1992
    %v2182 = vmax.f32 %v1994, %v1996
    %v2183 = vmax.f32 %v2000, %v2002
    %v2184 = vmax.f32 %v2004, %v2006
    %v2185 = vmax.f32 %v2010, %v2012
    %v2186 = vmax.f32 %v2014, %v2016
    %v2187 = vmax.f32 %v2020, %v2022
    %v2188 = vmax.f32 %v2024, %v2026
    %v2189 = vmax.f32 %v2030, %v2032
    %v2190 = vmax.f32 %v2034, %v2036
    %v2191 = vmax.f32 %v2040, %v2042
    %v2192 = vmax.f32 %v2044, %v2046
    %v2193 = vmax.f32 %v2050, %v2052
    %v2194 = vmax.f32 %v2054, %v2056
    %v2195 = vmax.f32 %v2060, %v2062
    %v2196 = vmax.f32 %v2064, %v2066
    %v2197 = vmax.f32 %v2103, %v2105
    %v2198 = vmax.f32 %v2107, %v2109
    %v2199 = vmax.f32 %v2113, %v2115
    %v2200 = vmax.f32 %v2117, %v2119
    %v2201 = vmax.f32 %v2123, %v2125
    %v2202 = vmax.f32 %v2127, %v2129
    %v2203 = vmax.f32 %v2133, %v2135
    %v2204 = vmax.f32 %v2137, %v2139
    %v2205 = vmax.f32 %v2143, %v2145
    %v2206 = vmax.f32 %v2147, %v2149
    %v2207 = vmax.f32 %v2153, %v2155
    %v2208 = vmax.f32 %v2157, %v2159
    %v2209 = vmax.f32 %v2163, %v2165
    %v2210 = vmax.f32 %v2167, %v2169
    %v2211 = vmax.f32 %v2173, %v2175
    %v2212 = vmax.f32 %v2177, %v2179
    %v2213 = vmax.f32 %v2181, %v2197
    %v2214 = vmax.f32 %v2182, %v2198
    %v2215 = vmax.f32 %v2183, %v2199
    %v2216 = vmax.f32 %v2184, %v2200
    %v2217 = vmax.f32 %v2185, %v2201
    %v2218 = vmax.f32 %v2186, %v2202
    %v2219 = vmax.f32 %v2187, %v2203
    %v2220 = vmax.f32 %v2188, %v2204
    %v2221 = vmax.f32 %v2189, %v2205
    %v2222 = vmax.f32 %v2190, %v2206
    %v2223 = vmax.f32 %v2191, %v2207
    %v2224 = vmax.f32 %v2192, %v2208
    %v2225 = vmax.f32 %v2193, %v2209
    %v2226 = vmax.f32 %v2194, %v2210
    %v2227 = vmax.f32 %v2195, %v2211
    %v2228 = vmax.f32 %v2196, %v2212
    %v2229 = vld [vmem:[%s4] sm:$0x1]
    %v2231 = vlaneseq
    %v2232 = vshrl.u32 %v2231, 7
    %v2233 = vsub.s32 0, %v2232
    %v2234 = vrot.slane %v2229, %v2233
    %v2236 = vadd.f32 %v2213, %v2234
    %v2237 = vadd.f32 %v2214, %v2234
    %v2238 = vadd.f32 %v2215, %v2234
    %v2239 = vadd.f32 %v2216, %v2234
    %v2240 = vadd.f32 %v2217, %v2234
    %v2241 = vadd.f32 %v2218, %v2234
    %v2242 = vadd.f32 %v2219, %v2234
    %v2243 = vadd.f32 %v2220, %v2234
    %v2244 = vadd.f32 %v2221, %v2234
    %v2245 = vadd.f32 %v2222, %v2234
    %v2246 = vadd.f32 %v2223, %v2234
    %v2247 = vadd.f32 %v2224, %v2234
    %v2248 = vadd.f32 %v2225, %v2234
    %v2249 = vadd.f32 %v2226, %v2234
    %v2250 = vadd.f32 %v2227, %v2234
    %v2251 = vadd.f32 %v2228, %v2234
    %v2252 = vmax.f32 %v2236, 0.0
    %v2253 = vmax.f32 %v2237, 0.0
    %v2254 = vmax.f32 %v2238, 0.0
    %v2255 = vmax.f32 %v2239, 0.0
    %v2256 = vmax.f32 %v2240, 0.0
    %v2257 = vmax.f32 %v2241, 0.0
    %v2258 = vmax.f32 %v2242, 0.0
    %v2259 = vmax.f32 %v2243, 0.0
    %v2260 = vmax.f32 %v2244, 0.0
    %v2261 = vmax.f32 %v2245, 0.0
    %v2262 = vmax.f32 %v2246, 0.0
    %v2263 = vmax.f32 %v2247, 0.0
    %v2264 = vmax.f32 %v2248, 0.0
    %v2265 = vmax.f32 %v2249, 0.0
    %v2266 = vmax.f32 %v2250, 0.0
    %v2267 = vmax.f32 %v2251, 0.0
    %v2268 = vpack.c.bf16 %v2253, %v2252
    %v2269 = vpack.c.bf16 %v2255, %v2254
    %v2270 = vpack.c.bf16 %v2257, %v2256
    %v2271 = vpack.c.bf16 %v2259, %v2258
    %v2272 = vpack.c.bf16 %v2261, %v2260
    %v2273 = vpack.c.bf16 %v2263, %v2262
    %v2274 = vpack.c.bf16 %v2265, %v2264
    %v2275 = vpack.c.bf16 %v2267, %v2266
    %v2276 = vld [vmem:[%s5] sm:$0xf]
    %v2277 = vld [vmem:[%s5 + $0x4] sm:$0xf]
    %v2278 = vld [vmem:[%s5 + $0x8] sm:$0xf]
    %v2279 = vld [vmem:[%s5 + $0xc] sm:$0xf]
    %v2280 = vld [vmem:[%s5 + $0x10] sm:$0xf]
    %v2281 = vld [vmem:[%s5 + $0x14] sm:$0xf]
    %v2282 = vld [vmem:[%s5 + $0x18] sm:$0xf]
    %v2283 = vld [vmem:[%s5 + $0x1c] sm:$0xf]
    %v2284 = vld [vmem:[%s5 + $0x20] sm:$0xf]
    %v2285 = vld [vmem:[%s5 + $0x24] sm:$0xf]
    %v2286 = vld [vmem:[%s5 + $0x28] sm:$0xf]
    %v2287 = vld [vmem:[%s5 + $0x2c] sm:$0xf]
    %v2288 = vld [vmem:[%s5 + $0x30] sm:$0xf]
    %v2289 = vld [vmem:[%s5 + $0x34] sm:$0xf]
    %v2290 = vld [vmem:[%s5 + $0x38] sm:$0xf]
    %v2291 = vld [vmem:[%s5 + $0x3c] sm:$0xf]
    %v2292 = vld [vmem:[%s6] sm:$0x1]
    %v2294 = vlaneseq
    %v2295 = vshrl.u32 %v2294, 7
    %v2296 = vsub.s32 0, %v2295
    %v2297 = vrot.slane %v2292, %v2296
    %v2315 = vunpack.c.l.b16 %v2276
    %v2316 = vunpack.c.l.b16 %v2277
    %v2317 = vunpack.c.l.b16 %v2278
    %v2318 = vunpack.c.l.b16 %v2279
    %v2319 = vunpack.c.l.b16 %v2280
    %v2320 = vunpack.c.l.b16 %v2281
    %v2321 = vunpack.c.l.b16 %v2282
    %v2322 = vunpack.c.l.b16 %v2283
    %v2323 = vunpack.c.l.b16 %v2284
    %v2324 = vunpack.c.l.b16 %v2285
    %v2325 = vunpack.c.l.b16 %v2286
    %v2326 = vunpack.c.l.b16 %v2287
    %v2327 = vunpack.c.l.b16 %v2288
    %v2328 = vunpack.c.l.b16 %v2289
    %v2329 = vunpack.c.l.b16 %v2290
    %v2330 = vunpack.c.l.b16 %v2291
    %v2331 = vpack.c.b16 %v2316, %v2315
    %v2332 = vpack.c.b16 %v2318, %v2317
    %v2333 = vpack.c.b16 %v2320, %v2319
    %v2334 = vpack.c.b16 %v2322, %v2321
    %v2335 = vpack.c.b16 %v2324, %v2323
    %v2336 = vpack.c.b16 %v2326, %v2325
    %v2337 = vpack.c.b16 %v2328, %v2327
    %v2338 = vpack.c.b16 %v2330, %v2329
    %2347 = vmatprep.subr.bf16.mxu0 0
    %2348 = vmatpush1.bf16.msra.mxu0 %v2338
    %2349 = vmatprep.subr.bf16.mxu0 0
    %2350 = vmatpush1.bf16.msra.mxu0 %v2337
    %2351 = vmatprep.subr.bf16.mxu0 0
    %2352 = vmatpush1.bf16.msra.mxu0 %v2336
    %2353 = vmatprep.subr.bf16.mxu0 0
    %2354 = vmatpush1.bf16.msra.mxu0 %v2335
    %2355 = vmatprep.subr.bf16.mxu0 0
    %2356 = vmatpush1.bf16.msra.mxu0 %v2334
    %2357 = vmatprep.subr.bf16.mxu0 0
    %2358 = vmatpush1.bf16.msra.mxu0 %v2333
    %2359 = vmatprep.subr.bf16.mxu0 0
    %2360 = vmatpush1.bf16.msra.mxu0 %v2332
    %2361 = vmatprep.subr.bf16.mxu0 0
    %2362 = vmatpush1.bf16.msra.mxu0 %v2331
    %2363 = vmatprep.subr.bf16.mxu0 0
    %2364 = vmatpush2.bf16.msra.mxu0 0
    %2365 = vmatprep.subr.bf16.mxu0 0
    %2366 = vmatpush2.bf16.msra.mxu0 0
    %2367 = vmatprep.subr.bf16.mxu0 0
    %2368 = vmatpush2.bf16.msra.mxu0 0
    %2369 = vmatprep.subr.bf16.mxu0 0
    %2370 = vmatpush2.bf16.msra.mxu0 0
    %2371 = vmatprep.subr.bf16.mxu0 0
    %2372 = vmatpush2.bf16.msra.mxu0 0
    %2373 = vmatprep.subr.bf16.mxu0 0
    %2374 = vmatpush2.bf16.msra.mxu0 0
    %2375 = vmatprep.subr.bf16.mxu0 0
    %2376 = vmatpush2.bf16.msra.mxu0 0
    %2377 = vmatprep.subr.bf16.mxu0 0
    %2378 = vmatpush2.bf16.msra.mxu0 0
    %2379 = vmatprep.mubr.bf16.mxu0 0
    %2380 = vmatmul.mubr.bf16.gmra.mxu0 %v2268
    %v2381 = vpop.f32.mrf.mxu0
    %v2382 = vadd.f32 %v2297, %v2381
    %v2383 = vpop.f32.mrf.mxu0
    %v2384 = vpop.f32.mrf.mxu0
    %v2385 = vadd.f32 %v2297, %v2384
    %v2386 = vpop.f32.mrf.mxu0
    %2387 = vmatprep.mubr.bf16.mxu0 0
    %2388 = vmatmul.mubr.bf16.gmra.mxu0 %v2269
    %v2389 = vpop.f32.mrf.mxu0
    %v2390 = vadd.f32 %v2297, %v2389
    %v2391 = vpop.f32.mrf.mxu0
    %v2392 = vpop.f32.mrf.mxu0
    %v2393 = vadd.f32 %v2297, %v2392
    %v2394 = vpop.f32.mrf.mxu0
    %2395 = vmatprep.mubr.bf16.mxu0 0
    %2396 = vmatmul.mubr.bf16.gmra.mxu0 %v2270
    %v2397 = vpop.f32.mrf.mxu0
    %v2398 = vadd.f32 %v2297, %v2397
    %v2399 = vpop.f32.mrf.mxu0
    %v2400 = vpop.f32.mrf.mxu0
    %v2401 = vadd.f32 %v2297, %v2400
    %v2402 = vpop.f32.mrf.mxu0
    %2403 = vmatprep.mubr.bf16.mxu0 0
    %2404 = vmatmul.mubr.bf16.gmra.mxu0 %v2271
    %v2405 = vpop.f32.mrf.mxu0
    %v2406 = vadd.f32 %v2297, %v2405
    %v2407 = vpop.f32.mrf.mxu0
    %v2408 = vpop.f32.mrf.mxu0
    %v2409 = vadd.f32 %v2297, %v2408
    %v2410 = vpop.f32.mrf.mxu0
    %2411 = vmatprep.mubr.bf16.mxu0 0
    %2412 = vmatmul.mubr.bf16.gmra.mxu0 %v2272
    %v2413 = vpop.f32.mrf.mxu0
    %v2414 = vadd.f32 %v2297, %v2413
    %v2415 = vpop.f32.mrf.mxu0
    %v2416 = vpop.f32.mrf.mxu0
    %v2417 = vadd.f32 %v2297, %v2416
    %v2418 = vpop.f32.mrf.mxu0
    %2419 = vmatprep.mubr.bf16.mxu0 0
    %2420 = vmatmul.mubr.bf16.gmra.mxu0 %v2273
    %v2421 = vpop.f32.mrf.mxu0
    %v2422 = vadd.f32 %v2297, %v2421
    %v2423 = vpop.f32.mrf.mxu0
    %v2424 = vpop.f32.mrf.mxu0
    %v2425 = vadd.f32 %v2297, %v2424
    %v2426 = vpop.f32.mrf.mxu0
    %2427 = vmatprep.mubr.bf16.mxu0 0
    %2428 = vmatmul.mubr.bf16.gmra.mxu0 %v2274
    %v2429 = vpop.f32.mrf.mxu0
    %v2430 = vadd.f32 %v2297, %v2429
    %v2431 = vpop.f32.mrf.mxu0
    %v2432 = vpop.f32.mrf.mxu0
    %v2433 = vadd.f32 %v2297, %v2432
    %v2434 = vpop.f32.mrf.mxu0
    %2435 = vmatprep.mubr.bf16.mxu0 0
    %2436 = vmatmul.mubr.bf16.gmra.mxu0 %v2275
    %v2437 = vpop.f32.mrf.mxu0
    %v2438 = vadd.f32 %v2297, %v2437
    %v2439 = vpop.f32.mrf.mxu0
    %v2440 = vpop.f32.mrf.mxu0
    %v2441 = vadd.f32 %v2297, %v2440
    %v2442 = vpop.f32.mrf.mxu0
    %2443 = vdwg.mxu0
    %v2444 = vmax.f32 %v2382, 0.0
    %v2445 = vmax.f32 %v2385, 0.0
    %v2446 = vmax.f32 %v2390, 0.0
    %v2447 = vmax.f32 %v2393, 0.0
    %v2448 = vmax.f32 %v2398, 0.0
    %v2449 = vmax.f32 %v2401, 0.0
    %v2450 = vmax.f32 %v2406, 0.0
    %v2451 = vmax.f32 %v2409, 0.0
    %v2452 = vmax.f32 %v2414, 0.0
    %v2453 = vmax.f32 %v2417, 0.0
    %v2454 = vmax.f32 %v2422, 0.0
    %v2455 = vmax.f32 %v2425, 0.0
    %v2456 = vmax.f32 %v2430, 0.0
    %v2457 = vmax.f32 %v2433, 0.0
    %v2458 = vmax.f32 %v2438, 0.0
    %v2459 = vmax.f32 %v2441, 0.0
    %v2460 = vpack.c.bf16 %v2445, %v2444
    %v2461 = vpack.c.bf16 %v2447, %v2446
    %v2462 = vpack.c.bf16 %v2449, %v2448
    %v2463 = vpack.c.bf16 %v2451, %v2450
    %v2464 = vpack.c.bf16 %v2453, %v2452
    %v2465 = vpack.c.bf16 %v2455, %v2454
    %v2466 = vpack.c.bf16 %v2457, %v2456
    %v2467 = vpack.c.bf16 %v2459, %v2458
    %v2468 = vld [vmem:[%s7] sm:$0xf]
    %v2469 = vld [vmem:[%s7 + $0x4] sm:$0xf]
    %v2470 = vld [vmem:[%s7 + $0x8] sm:$0xf]
    %v2471 = vld [vmem:[%s7 + $0xc] sm:$0xf]
    %v2472 = vld [vmem:[%s7 + $0x10] sm:$0xf]
    %v2473 = vld [vmem:[%s7 + $0x14] sm:$0xf]
    %v2474 = vld [vmem:[%s7 + $0x18] sm:$0xf]
    %v2475 = vld [vmem:[%s7 + $0x1c] sm:$0xf]
    %v2476 = vld [vmem:[%s7 + $0x20] sm:$0xf]
    %v2477 = vld [vmem:[%s7 + $0x24] sm:$0xf]
    %v2478 = vld [vmem:[%s7 + $0x28] sm:$0xf]
    %v2479 = vld [vmem:[%s7 + $0x2c] sm:$0xf]
    %v2480 = vld [vmem:[%s7 + $0x30] sm:$0xf]
    %v2481 = vld [vmem:[%s7 + $0x34] sm:$0xf]
    %v2482 = vld [vmem:[%s7 + $0x38] sm:$0xf]
    %v2483 = vld [vmem:[%s7 + $0x3c] sm:$0xf]
    %v2484 = vld [vmem:[%s8] sm:$0x1]
    %v2486 = vlaneseq
    %v2487 = vshrl.u32 %v2486, 7
    %v2488 = vsub.s32 0, %v2487
    %v2489 = vrot.slane %v2484, %v2488
    %v2507 = vunpack.c.l.b16 %v2468
    %v2508 = vunpack.c.l.b16 %v2469
    %v2509 = vunpack.c.l.b16 %v2470
    %v2510 = vunpack.c.l.b16 %v2471
    %v2511 = vunpack.c.l.b16 %v2472
    %v2512 = vunpack.c.l.b16 %v2473
    %v2513 = vunpack.c.l.b16 %v2474
    %v2514 = vunpack.c.l.b16 %v2475
    %v2515 = vunpack.c.l.b16 %v2476
    %v2516 = vunpack.c.l.b16 %v2477
    %v2517 = vunpack.c.l.b16 %v2478
    %v2518 = vunpack.c.l.b16 %v2479
    %v2519 = vunpack.c.l.b16 %v2480
    %v2520 = vunpack.c.l.b16 %v2481
    %v2521 = vunpack.c.l.b16 %v2482
    %v2522 = vunpack.c.l.b16 %v2483
    %v2523 = vpack.c.b16 %v2508, %v2507
    %v2524 = vpack.c.b16 %v2510, %v2509
    %v2525 = vpack.c.b16 %v2512, %v2511
    %v2526 = vpack.c.b16 %v2514, %v2513
    %v2527 = vpack.c.b16 %v2516, %v2515
    %v2528 = vpack.c.b16 %v2518, %v2517
    %v2529 = vpack.c.b16 %v2520, %v2519
    %v2530 = vpack.c.b16 %v2522, %v2521
    %2539 = vmatprep.subr.bf16.mxu0 0
    %2540 = vmatpush1.bf16.msra.mxu0 %v2530
    %2541 = vmatprep.subr.bf16.mxu0 0
    %2542 = vmatpush1.bf16.msra.mxu0 %v2529
    %2543 = vmatprep.subr.bf16.mxu0 0
    %2544 = vmatpush1.bf16.msra.mxu0 %v2528
    %2545 = vmatprep.subr.bf16.mxu0 0
    %2546 = vmatpush1.bf16.msra.mxu0 %v2527
    %2547 = vmatprep.subr.bf16.mxu0 0
    %2548 = vmatpush1.bf16.msra.mxu0 %v2526
    %2549 = vmatprep.subr.bf16.mxu0 0
    %2550 = vmatpush1.bf16.msra.mxu0 %v2525
    %2551 = vmatprep.subr.bf16.mxu0 0
    %2552 = vmatpush1.bf16.msra.mxu0 %v2524
    %2553 = vmatprep.subr.bf16.mxu0 0
    %2554 = vmatpush1.bf16.msra.mxu0 %v2523
    %2555 = vmatprep.subr.bf16.mxu0 0
    %2556 = vmatpush2.bf16.msra.mxu0 0
    %2557 = vmatprep.subr.bf16.mxu0 0
    %2558 = vmatpush2.bf16.msra.mxu0 0
    %2559 = vmatprep.subr.bf16.mxu0 0
    %2560 = vmatpush2.bf16.msra.mxu0 0
    %2561 = vmatprep.subr.bf16.mxu0 0
    %2562 = vmatpush2.bf16.msra.mxu0 0
    %2563 = vmatprep.subr.bf16.mxu0 0
    %2564 = vmatpush2.bf16.msra.mxu0 0
    %2565 = vmatprep.subr.bf16.mxu0 0
    %2566 = vmatpush2.bf16.msra.mxu0 0
    %2567 = vmatprep.subr.bf16.mxu0 0
    %2568 = vmatpush2.bf16.msra.mxu0 0
    %2569 = vmatprep.subr.bf16.mxu0 0
    %2570 = vmatpush2.bf16.msra.mxu0 0
    %2571 = vmatprep.mubr.bf16.mxu0 0
    %2572 = vmatmul.mubr.bf16.gmra.mxu0 %v2460
    %v2573 = vpop.f32.mrf.mxu0
    %v2574 = vadd.f32 %v2489, %v2573
    %v2575 = vpop.f32.mrf.mxu0
    %v2576 = vpop.f32.mrf.mxu0
    %v2577 = vadd.f32 %v2489, %v2576
    %v2578 = vpop.f32.mrf.mxu0
    %2579 = vmatprep.mubr.bf16.mxu0 0
    %2580 = vmatmul.mubr.bf16.gmra.mxu0 %v2461
    %v2581 = vpop.f32.mrf.mxu0
    %v2582 = vadd.f32 %v2489, %v2581
    %v2583 = vpop.f32.mrf.mxu0
    %v2584 = vpop.f32.mrf.mxu0
    %v2585 = vadd.f32 %v2489, %v2584
    %v2586 = vpop.f32.mrf.mxu0
    %2587 = vmatprep.mubr.bf16.mxu0 0
    %2588 = vmatmul.mubr.bf16.gmra.mxu0 %v2462
    %v2589 = vpop.f32.mrf.mxu0
    %v2590 = vadd.f32 %v2489, %v2589
    %v2591 = vpop.f32.mrf.mxu0
    %v2592 = vpop.f32.mrf.mxu0
    %v2593 = vadd.f32 %v2489, %v2592
    %v2594 = vpop.f32.mrf.mxu0
    %2595 = vmatprep.mubr.bf16.mxu0 0
    %2596 = vmatmul.mubr.bf16.gmra.mxu0 %v2463
    %v2597 = vpop.f32.mrf.mxu0
    %v2598 = vadd.f32 %v2489, %v2597
    %v2599 = vpop.f32.mrf.mxu0
    %v2600 = vpop.f32.mrf.mxu0
    %v2601 = vadd.f32 %v2489, %v2600
    %v2602 = vpop.f32.mrf.mxu0
    %2603 = vmatprep.mubr.bf16.mxu0 0
    %2604 = vmatmul.mubr.bf16.gmra.mxu0 %v2464
    %v2605 = vpop.f32.mrf.mxu0
    %v2606 = vadd.f32 %v2489, %v2605
    %v2607 = vpop.f32.mrf.mxu0
    %v2608 = vpop.f32.mrf.mxu0
    %v2609 = vadd.f32 %v2489, %v2608
    %v2610 = vpop.f32.mrf.mxu0
    %2611 = vmatprep.mubr.bf16.mxu0 0
    %2612 = vmatmul.mubr.bf16.gmra.mxu0 %v2465
    %v2613 = vpop.f32.mrf.mxu0
    %v2614 = vadd.f32 %v2489, %v2613
    %v2615 = vpop.f32.mrf.mxu0
    %v2616 = vpop.f32.mrf.mxu0
    %v2617 = vadd.f32 %v2489, %v2616
    %v2618 = vpop.f32.mrf.mxu0
    %2619 = vmatprep.mubr.bf16.mxu0 0
    %2620 = vmatmul.mubr.bf16.gmra.mxu0 %v2466
    %v2621 = vpop.f32.mrf.mxu0
    %v2622 = vadd.f32 %v2489, %v2621
    %v2623 = vpop.f32.mrf.mxu0
    %v2624 = vpop.f32.mrf.mxu0
    %v2625 = vadd.f32 %v2489, %v2624
    %v2626 = vpop.f32.mrf.mxu0
    %2627 = vmatprep.mubr.bf16.mxu0 0
    %2628 = vmatmul.mubr.bf16.gmra.mxu0 %v2467
    %v2629 = vpop.f32.mrf.mxu0
    %v2630 = vadd.f32 %v2489, %v2629
    %v2631 = vpop.f32.mrf.mxu0
    %v2632 = vpop.f32.mrf.mxu0
    %v2633 = vadd.f32 %v2489, %v2632
    %v2634 = vpop.f32.mrf.mxu0
    %2635 = vdwg.mxu0
    %v2636 = vmax.f32 %v2574, 0.0
    %v2637 = vmax.f32 %v2577, 0.0
    %v2638 = vmax.f32 %v2582, 0.0
    %v2639 = vmax.f32 %v2585, 0.0
    %v2640 = vmax.f32 %v2590, 0.0
    %v2641 = vmax.f32 %v2593, 0.0
    %v2642 = vmax.f32 %v2598, 0.0
    %v2643 = vmax.f32 %v2601, 0.0
    %v2644 = vmax.f32 %v2606, 0.0
    %v2645 = vmax.f32 %v2609, 0.0
    %v2646 = vmax.f32 %v2614, 0.0
    %v2647 = vmax.f32 %v2617, 0.0
    %v2648 = vmax.f32 %v2622, 0.0
    %v2649 = vmax.f32 %v2625, 0.0
    %v2650 = vmax.f32 %v2630, 0.0
    %v2651 = vmax.f32 %v2633, 0.0
    %v2652 = vpack.c.bf16 %v2637, %v2636
    %v2653 = vpack.c.bf16 %v2639, %v2638
    %v2654 = vpack.c.bf16 %v2641, %v2640
    %v2655 = vpack.c.bf16 %v2643, %v2642
    %v2656 = vpack.c.bf16 %v2645, %v2644
    %v2657 = vpack.c.bf16 %v2647, %v2646
    %v2658 = vpack.c.bf16 %v2649, %v2648
    %v2659 = vpack.c.bf16 %v2651, %v2650
    %v2660 = vld [vmem:[%s9] sm:$0xf]
    %v2661 = vld [vmem:[%s9 + $0x4] sm:$0xf]
    %v2662 = vld [vmem:[%s9 + $0x8] sm:$0xf]
    %v2663 = vld [vmem:[%s9 + $0xc] sm:$0xf]
    %v2664 = vld [vmem:[%s9 + $0x10] sm:$0xf]
    %v2665 = vld [vmem:[%s9 + $0x14] sm:$0xf]
    %v2666 = vld [vmem:[%s9 + $0x18] sm:$0xf]
    %v2667 = vld [vmem:[%s9 + $0x1c] sm:$0xf]
    %v2668 = vld [vmem:[%s9 + $0x20] sm:$0xf]
    %v2669 = vld [vmem:[%s9 + $0x24] sm:$0xf]
    %v2670 = vld [vmem:[%s9 + $0x28] sm:$0xf]
    %v2671 = vld [vmem:[%s9 + $0x2c] sm:$0xf]
    %v2672 = vld [vmem:[%s9 + $0x30] sm:$0xf]
    %v2673 = vld [vmem:[%s9 + $0x34] sm:$0xf]
    %v2674 = vld [vmem:[%s9 + $0x38] sm:$0xf]
    %v2675 = vld [vmem:[%s9 + $0x3c] sm:$0xf]
    %v2676 = vld [vmem:[%s10] sm:$0x1]
    %v2678 = vlaneseq
    %v2679 = vshrl.u32 %v2678, 7
    %v2680 = vsub.s32 0, %v2679
    %v2681 = vrot.slane %v2676, %v2680
    %v2699 = vunpack.c.l.b16 %v2660
    %v2700 = vunpack.c.l.b16 %v2661
    %v2701 = vunpack.c.l.b16 %v2662
    %v2702 = vunpack.c.l.b16 %v2663
    %v2703 = vunpack.c.l.b16 %v2664
    %v2704 = vunpack.c.l.b16 %v2665
    %v2705 = vunpack.c.l.b16 %v2666
    %v2706 = vunpack.c.l.b16 %v2667
    %v2707 = vunpack.c.l.b16 %v2668
    %v2708 = vunpack.c.l.b16 %v2669
    %v2709 = vunpack.c.l.b16 %v2670
    %v2710 = vunpack.c.l.b16 %v2671
    %v2711 = vunpack.c.l.b16 %v2672
    %v2712 = vunpack.c.l.b16 %v2673
    %v2713 = vunpack.c.l.b16 %v2674
    %v2714 = vunpack.c.l.b16 %v2675
    %v2715 = vpack.c.b16 %v2700, %v2699
    %v2716 = vpack.c.b16 %v2702, %v2701
    %v2717 = vpack.c.b16 %v2704, %v2703
    %v2718 = vpack.c.b16 %v2706, %v2705
    %v2719 = vpack.c.b16 %v2708, %v2707
    %v2720 = vpack.c.b16 %v2710, %v2709
    %v2721 = vpack.c.b16 %v2712, %v2711
    %v2722 = vpack.c.b16 %v2714, %v2713
    %2731 = vmatprep.subr.bf16.mxu0 0
    %2732 = vmatpush1.bf16.msra.mxu0 %v2722
    %2733 = vmatprep.subr.bf16.mxu0 0
    %2734 = vmatpush1.bf16.msra.mxu0 %v2721
    %2735 = vmatprep.subr.bf16.mxu0 0
    %2736 = vmatpush1.bf16.msra.mxu0 %v2720
    %2737 = vmatprep.subr.bf16.mxu0 0
    %2738 = vmatpush1.bf16.msra.mxu0 %v2719
    %2739 = vmatprep.subr.bf16.mxu0 0
    %2740 = vmatpush1.bf16.msra.mxu0 %v2718
    %2741 = vmatprep.subr.bf16.mxu0 0
    %2742 = vmatpush1.bf16.msra.mxu0 %v2717
    %2743 = vmatprep.subr.bf16.mxu0 0
    %2744 = vmatpush1.bf16.msra.mxu0 %v2716
    %2745 = vmatprep.subr.bf16.mxu0 0
    %2746 = vmatpush1.bf16.msra.mxu0 %v2715
    %2747 = vmatprep.subr.bf16.mxu0 0
    %2748 = vmatpush2.bf16.msra.mxu0 0
    %2749 = vmatprep.subr.bf16.mxu0 0
    %2750 = vmatpush2.bf16.msra.mxu0 0
    %2751 = vmatprep.subr.bf16.mxu0 0
    %2752 = vmatpush2.bf16.msra.mxu0 0
    %2753 = vmatprep.subr.bf16.mxu0 0
    %2754 = vmatpush2.bf16.msra.mxu0 0
    %2755 = vmatprep.subr.bf16.mxu0 0
    %2756 = vmatpush2.bf16.msra.mxu0 0
    %2757 = vmatprep.subr.bf16.mxu0 0
    %2758 = vmatpush2.bf16.msra.mxu0 0
    %2759 = vmatprep.subr.bf16.mxu0 0
    %2760 = vmatpush2.bf16.msra.mxu0 0
    %2761 = vmatprep.subr.bf16.mxu0 0
    %2762 = vmatpush2.bf16.msra.mxu0 0
    %2763 = vmatprep.mubr.bf16.mxu0 0
    %2764 = vmatmul.mubr.bf16.gmra.mxu0 %v2652
    %v2765 = vpop.f32.mrf.mxu0
    %v2766 = vadd.f32 %v2681, %v2765
    %v2767 = vpop.f32.mrf.mxu0
    %v2768 = vpop.f32.mrf.mxu0
    %v2769 = vadd.f32 %v2681, %v2768
    %v2770 = vpop.f32.mrf.mxu0
    %2771 = vmatprep.mubr.bf16.mxu0 0
    %2772 = vmatmul.mubr.bf16.gmra.mxu0 %v2653
    %v2773 = vpop.f32.mrf.mxu0
    %v2774 = vadd.f32 %v2681, %v2773
    %v2775 = vpop.f32.mrf.mxu0
    %v2776 = vpop.f32.mrf.mxu0
    %v2777 = vadd.f32 %v2681, %v2776
    %v2778 = vpop.f32.mrf.mxu0
    %2779 = vmatprep.mubr.bf16.mxu0 0
    %2780 = vmatmul.mubr.bf16.gmra.mxu0 %v2654
    %v2781 = vpop.f32.mrf.mxu0
    %v2782 = vadd.f32 %v2681, %v2781
    %v2783 = vpop.f32.mrf.mxu0
    %v2784 = vpop.f32.mrf.mxu0
    %v2785 = vadd.f32 %v2681, %v2784
    %v2786 = vpop.f32.mrf.mxu0
    %2787 = vmatprep.mubr.bf16.mxu0 0
    %2788 = vmatmul.mubr.bf16.gmra.mxu0 %v2655
    %v2789 = vpop.f32.mrf.mxu0
    %v2790 = vadd.f32 %v2681, %v2789
    %v2791 = vpop.f32.mrf.mxu0
    %v2792 = vpop.f32.mrf.mxu0
    %v2793 = vadd.f32 %v2681, %v2792
    %v2794 = vpop.f32.mrf.mxu0
    %2795 = vmatprep.mubr.bf16.mxu0 0
    %2796 = vmatmul.mubr.bf16.gmra.mxu0 %v2656
    %v2797 = vpop.f32.mrf.mxu0
    %v2798 = vadd.f32 %v2681, %v2797
    %v2799 = vpop.f32.mrf.mxu0
    %v2800 = vpop.f32.mrf.mxu0
    %v2801 = vadd.f32 %v2681, %v2800
    %v2802 = vpop.f32.mrf.mxu0
    %2803 = vmatprep.mubr.bf16.mxu0 0
    %2804 = vmatmul.mubr.bf16.gmra.mxu0 %v2657
    %v2805 = vpop.f32.mrf.mxu0
    %v2806 = vadd.f32 %v2681, %v2805
    %v2807 = vpop.f32.mrf.mxu0
    %v2808 = vpop.f32.mrf.mxu0
    %v2809 = vadd.f32 %v2681, %v2808
    %v2810 = vpop.f32.mrf.mxu0
    %2811 = vmatprep.mubr.bf16.mxu0 0
    %2812 = vmatmul.mubr.bf16.gmra.mxu0 %v2658
    %v2813 = vpop.f32.mrf.mxu0
    %v2814 = vadd.f32 %v2681, %v2813
    %v2815 = vpop.f32.mrf.mxu0
    %v2816 = vpop.f32.mrf.mxu0
    %v2817 = vadd.f32 %v2681, %v2816
    %v2818 = vpop.f32.mrf.mxu0
    %2819 = vmatprep.mubr.bf16.mxu0 0
    %2820 = vmatmul.mubr.bf16.gmra.mxu0 %v2659
    %v2821 = vpop.f32.mrf.mxu0
    %v2822 = vadd.f32 %v2681, %v2821
    %v2823 = vpop.f32.mrf.mxu0
    %v2824 = vpop.f32.mrf.mxu0
    %v2825 = vadd.f32 %v2681, %v2824
    %v2826 = vpop.f32.mrf.mxu0
    %2827 = vdwg.mxu0
    %2828 = vst [vmem:[%s11] sm:$0xff] %v2766
    %2829 = vst [vmem:[%s11 + $0x8] sm:$0xff] %v2769
    %2830 = vst [vmem:[%s11 + $0x10] sm:$0xff] %v2774
    %2831 = vst [vmem:[%s11 + $0x18] sm:$0xff] %v2777
    %2832 = vst [vmem:[%s11 + $0x20] sm:$0xff] %v2782
    %2833 = vst [vmem:[%s11 + $0x28] sm:$0xff] %v2785
    %2834 = vst [vmem:[%s11 + $0x30] sm:$0xff] %v2790
    %2835 = vst [vmem:[%s11 + $0x38] sm:$0xff] %v2793
    %2836 = vst [vmem:[%s11 + $0x40] sm:$0xff] %v2798
    %2837 = vst [vmem:[%s11 + $0x48] sm:$0xff] %v2801
    %2838 = vst [vmem:[%s11 + $0x50] sm:$0xff] %v2806
    %2839 = vst [vmem:[%s11 + $0x58] sm:$0xff] %v2809
    %2840 = vst [vmem:[%s11 + $0x60] sm:$0xff] %v2814
    %2841 = vst [vmem:[%s11 + $0x68] sm:$0xff] %v2817
    %2842 = vst [vmem:[%s11 + $0x70] sm:$0xff] %v2822
    %2843 = vst [vmem:[%s11 + $0x78] sm:$0xff] %v2825
    // Predicated region
    $region54: #{netb_forward.1} parent=1 // pred_check
      _
    $region55: #{netb_forward.1} parent=1 // pred_check_branch
      %2845 = sbr.rel (0) target = $region57
    $region56: #{netb_forward.1} parent=1 // pred_region
      _
    $region57: #{netb_forward.1} parent=1 // pred_fallthru
      _
    // Predicated region
    $region58: #{netb_forward.1} parent=1 // pred_check
      _
    $region59: #{netb_forward.1} parent=1 // pred_check_branch
      %2847 = sbr.rel (0) target = $region61
    $region60: #{netb_forward.1} parent=1 // pred_region
      _
    $region61: #{netb_forward.1} parent=1 // pred_fallthru
      _
    %2848 = vsyncpa [#allocation3], 1
    %2849 = vsyncpa [#allocation5], 1

</llo_original>
